<compile_context>
chip_gen: v7x
topology: tpu7x:2x2x1
jax: 0.10.0
libtpu: 0.0.40
codegen_flags: <defaults>
</compile_context>

<pallas_src>
import functools

import jax
import jax.numpy as jnp
from jax.experimental import pallas as pl
from jax.experimental.pallas import tpu as pltpu

LANE = 128      # vreg lane width: pad all feature dims to a multiple of this.
SUBLANE = 16    # bf16 sublane tiling: batch tiles are multiples of this.


def _round_up(n, m):
    return ((n + m - 1) // m) * m


def _cdiv(a, b):
    return -(-a // b)


@functools.lru_cache(maxsize=None)
def _vmem_capacity_bytes():
    """Physical VMEM per core; conservative fallback (v7x) if query fails."""
    try:
        return int(pltpu.get_tpu_info().vmem_capacity_bytes)
    except Exception:
        return 64 << 20


def _autoencoder_kernel(h1_pad, h2_pad, in_pad,
                        x_ref, w1_ref, w2_ref, w3_ref, w4_ref, b_ref,
                        enc_ref, dec_ref):
    """One batch tile; all four layers fused, bf16 weights resident in VMEM."""

    def sigmoid(z):
        # Exact sigmoid with a single EUP transcendental per element.
        return 0.5 * jnp.tanh(0.5 * z) + 0.5

    x = x_ref[...].astype(jnp.bfloat16)

    # Biases are packed row-wise into a single (4, max_pad) f32 buffer.
    b1 = b_ref[0:1, :h1_pad]
    b2 = b_ref[1:2, :h2_pad]
    b3 = b_ref[2:3, :h1_pad]
    b4 = b_ref[3:4, :in_pad]

    # Encoder (bf16 MXU, f32 accumulate, f32 elementwise)
    h1 = sigmoid(
        jnp.dot(x, w1_ref[...], preferred_element_type=jnp.float32) + b1)
    enc = sigmoid(
        jnp.dot(h1.astype(jnp.bfloat16), w2_ref[...],
                preferred_element_type=jnp.float32) + b2)

    # Decoder
    h3 = sigmoid(
        jnp.dot(enc.astype(jnp.bfloat16), w3_ref[...],
                preferred_element_type=jnp.float32) + b3)
    dec = sigmoid(
        jnp.dot(h3.astype(jnp.bfloat16), w4_ref[...],
                preferred_element_type=jnp.float32) + b4)

    enc_ref[...] = enc.astype(enc_ref.dtype)
    dec_ref[...] = dec.astype(dec_ref.dtype)


def prepare_params(params, lane=LANE, weight_dtype=jnp.bfloat16):
    """One-time conversion of PyTorch-layout params (W[out,in], b[out]) to
    kernel layout: transposed to [in, out], cast to bf16 and zero-padded to
    `lane` multiples. Call once at init/load time, NOT per forward call."""
    input_size = params["w1"].shape[1]
    h1 = params["w1"].shape[0]
    h2 = params["w2"].shape[0]
    ip, h1p, h2p = (_round_up(d, lane) for d in (input_size, h1, h2))
    max_p = max(ip, h1p, h2p)

    def pad_t(w, rows_pad, cols_pad):
        wt = w.T.astype(weight_dtype)  # [in, out]
        return jnp.zeros((rows_pad, cols_pad), weight_dtype).at[
            :wt.shape[0], :wt.shape[1]].set(wt)

    b = jnp.zeros((4, max_p), jnp.float32)
    b = b.at[0, :h1].set(params["b1"].astype(jnp.float32))
    b = b.at[1, :h2].set(params["b2"].astype(jnp.float32))
    b = b.at[2, :h1].set(params["b3"].astype(jnp.float32))
    b = b.at[3, :input_size].set(params["b4"].astype(jnp.float32))

    return {
        "w1": pad_t(params["w1"], ip, h1p),   # [in_pad, h1_pad]  bf16
        "w2": pad_t(params["w2"], h1p, h2p),  # [h1_pad, h2_pad]  bf16
        "w3": pad_t(params["w3"], h2p, h1p),  # [h2_pad, h1_pad]  bf16
        "w4": pad_t(params["w4"], h1p, ip),   # [h1_pad, in_pad]  bf16
        "b": b,                               # [4, max_pad]      f32
    }


@functools.partial(jax.jit, static_argnames=("hidden_size2", "batch_tile",
                                              "single_buffer_resident"))
def autoencoder_forward(x, kparams, *, hidden_size2, batch_tile=1024,
                        single_buffer_resident=True):
    """x: [B, input_size]; kparams: output of prepare_params(). Returns
    (encoded [B, hidden_size2], decoded [B, input_size]) in float32."""
    B, input_size = x.shape
    in_pad, h1_pad = kparams["w1"].shape
    h2_pad = kparams["w2"].shape[1]
    max_pad = kparams["b"].shape[1]
    w_item = jnp.dtype(kparams["w1"].dtype).itemsize
    x_item = jnp.dtype(x.dtype).itemsize

    # --- VMEM budget -> cap the batch tile, set an explicit scoped limit. ---
    vmem_cap = _vmem_capacity_bytes()
    budget = int(vmem_cap * 0.70)                       # leave headroom
    w_bufs = 1 if single_buffer_resident else 2
    weight_bytes = w_bufs * w_item * (in_pad * h1_pad + h1_pad * h2_pad
                                      + h2_pad * h1_pad + h1_pad * in_pad)
    bias_bytes = w_bufs * 4 * 4 * max_pad
    per_row_bytes = (
        2 * in_pad * min(x_item, 2)            # x tile (bf16 when padded), 2x buffered
        + 2 * h2_pad * 4 + 2 * in_pad * 4      # enc/dec output tiles, 2x buffered
        + (h1_pad + h2_pad + h1_pad) * 4       # f32 intermediates h1/enc/h3
        + (in_pad + h1_pad + h2_pad + h1_pad) * 2)   # bf16 copies fed to the MXU
    tb_cap = max(SUBLANE,
                 ((budget - weight_bytes - bias_bytes) // per_row_bytes)
                 // SUBLANE * SUBLANE)
    batch_tile = max(SUBLANE, min(batch_tile, tb_cap))

    # --- Balanced batch tiles; >=2 grid steps when the batch allows (so the
    # "parallel" axis can shard across both v7x TensorCores). ---
    n_tiles = max(_cdiv(B, batch_tile), 2 if B >= 2 * SUBLANE else 1)
    tb = _round_up(_cdiv(B, n_tiles), SUBLANE)
    b_pad = n_tiles * tb
    grid = (n_tiles,)

    # --- Conditional input padding (fused pad+bf16 cast, single pass). ---
    if b_pad != B or in_pad != input_size:
        xp = jnp.zeros((b_pad, in_pad), jnp.bfloat16)
        xp = xp.at[:B, :input_size].set(x.astype(jnp.bfloat16))
    else:
        xp = x  # streamed as-is; kernel casts to bf16 before the first dot

    flops = 2 * b_pad * (in_pad * h1_pad + h1_pad * h2_pad
                         + h2_pad * h1_pad + h1_pad * in_pad)
    # sigmoid via tanh: exactly one transcendental per activation element.
    transcendentals = b_pad * (h1_pad + h2_pad + h1_pad + in_pad)
    bytes_accessed = (
        xp.size * jnp.dtype(xp.dtype).itemsize
        + w_item * (kparams["w1"].size + kparams["w2"].size
                    + kparams["w3"].size + kparams["w4"].size)
        + 4 * kparams["b"].size
        + 4 * (b_pad * h2_pad + b_pad * in_pad))
    cost = pl.CostEstimate(flops=flops, transcendentals=transcendentals,
                           bytes_accessed=bytes_accessed)

    def resident(shape):
        # Same block for every grid step -> stays in VMEM, fetched once.
        if single_buffer_resident:
            return pl.BlockSpec(shape, lambda i: (0, 0),
                                pipeline_mode=pl.Buffered(1))
        return pl.BlockSpec(shape, lambda i: (0, 0))

    kernel = functools.partial(_autoencoder_kernel, h1_pad, h2_pad, in_pad)

    enc_p, dec_p = pl.pallas_call(
        kernel,
        out_shape=(
            jax.ShapeDtypeStruct((b_pad, h2_pad), jnp.float32),
            jax.ShapeDtypeStruct((b_pad, in_pad), jnp.float32),
        ),
        grid=grid,
        in_specs=[
            pl.BlockSpec((tb, in_pad), lambda i: (i, 0)),   # x: batch-tiled
            resident(kparams["w1"].shape),
            resident(kparams["w2"].shape),
            resident(kparams["w3"].shape),
            resident(kparams["w4"].shape),
            resident(kparams["b"].shape),
        ],
        out_specs=(
            pl.BlockSpec((tb, h2_pad), lambda i: (i, 0)),
            pl.BlockSpec((tb, in_pad), lambda i: (i, 0)),
        ),
        compiler_params=pltpu.CompilerParams(
            dimension_semantics=("parallel",),
            vmem_limit_bytes=int(vmem_cap * 0.75)),
        cost_estimate=cost,
    )(xp, kparams["w1"], kparams["w2"], kparams["w3"], kparams["w4"],
      kparams["b"])

    # Strip padding only if any was added (lane-dense stores inside the
    # kernel; the slice is skipped entirely for aligned shapes).
    enc_out = enc_p[:B, :hidden_size2] \
        if (b_pad != B or h2_pad != hidden_size2) else enc_p
    dec_out = dec_p[:B, :input_size] \
        if (b_pad != B or in_pad != input_size) else dec_p
    return enc_out, dec_out


def init_params(key, input_size, hidden_size1, hidden_size2):
    """PyTorch-layout init mimicking nn.Linear default U(-1/sqrt(fan_in), ...)."""
    def linear(key, out_f, in_f):
        kw, kb = jax.random.split(key)
        bound = 1.0 / jnp.sqrt(in_f)
        w = jax.random.uniform(kw, (out_f, in_f), jnp.float32, -bound, bound)
        b = jax.random.uniform(kb, (out_f,), jnp.float32, -bound, bound)
        return w, b

    k1, k2, k3, k4 = jax.random.split(key, 4)
    w1, b1 = linear(k1, hidden_size1, input_size)
    w2, b2 = linear(k2, hidden_size2, hidden_size1)
    w3, b3 = linear(k3, hidden_size1, hidden_size2)
    w4, b4 = linear(k4, input_size, hidden_size1)
    return {"w1": w1, "b1": b1, "w2": w2, "b2": b2,
            "w3": w3, "b3": b3, "w4": w4, "b4": b4}


def reference_forward(x, p):
    sig = jax.nn.sigmoid
    h1 = sig(x @ p["w1"].T + p["b1"])
    enc = sig(h1 @ p["w2"].T + p["b2"])
    h3 = sig(enc @ p["w3"].T + p["b3"])
    dec = sig(h3 @ p["w4"].T + p["b4"])
    return enc, dec


if __name__ == "__main__":
    input_size, hidden_size1, hidden_size2 = 64, 32, 16
    batch = 8

    key = jax.random.PRNGKey(0)
    kx, kp = jax.random.split(key)
    x = jax.random.normal(kx, (batch, input_size), jnp.float32)
    params = init_params(kp, input_size, hidden_size1, hidden_size2)

    # One-time layout conversion (transpose + bf16 cast + lane padding).
    kparams = jax.tree_util.tree_map(jax.block_until_ready,
                                     prepare_params(params))

    def run(single_buffer):
        enc, dec = autoencoder_forward(x, kparams, hidden_size2=hidden_size2,
                                       single_buffer_resident=single_buffer)
        jax.block_until_ready((enc, dec))
        return enc, dec

    try:
        enc, dec = run(True)
    except Exception:
        # Fallback for JAX builds that reject pipeline_mode=pl.Buffered(1).
        enc, dec = run(False)

    enc_ref, dec_ref = reference_forward(x, params)
    assert enc.shape == (batch, hidden_size2)
    assert dec.shape == (batch, input_size)
    # bf16 MXU path: loosen tolerance vs. the f32 reference.
    assert jnp.allclose(enc, enc_ref, atol=2e-2)
    assert jnp.allclose(dec, dec_ref, atol=2e-2)

    print("KERNEL_OK")
</pallas_src>

<mosaic_0001>
module attributes {stable_mosaic.version = 11 : i64} {
  func.func @_autoencoder_kernel(%arg0: i32, %arg1: memref<16x128xbf16, #tpu.memory_space<vmem>>, %arg2: memref<128x128xbf16, #tpu.memory_space<vmem>>, %arg3: memref<128x128xbf16, #tpu.memory_space<vmem>>, %arg4: memref<128x128xbf16, #tpu.memory_space<vmem>>, %arg5: memref<128x128xbf16, #tpu.memory_space<vmem>>, %arg6: memref<4x128xf32, #tpu.memory_space<vmem>>, %arg7: memref<16x128xf32, #tpu.memory_space<vmem>>, %arg8: memref<16x128xf32, #tpu.memory_space<vmem>>) attributes {dimension_semantics = [#tpu.dimension_semantics<parallel>], iteration_bounds = array<i64: 1>, scalar_prefetch = 0 : i64, scratch_operands = 0 : i64, tpu.core_type = #tpu.core_type<tc>, window_params = [{transform_indices = @transform_0, window_bounds = array<i64: 16, 128>}, {pipeline_mode = #tpu.pipeline_mode<synchronous>, transform_indices = @transform_1, window_bounds = array<i64: 128, 128>}, {pipeline_mode = #tpu.pipeline_mode<synchronous>, transform_indices = @transform_2, window_bounds = array<i64: 128, 128>}, {pipeline_mode = #tpu.pipeline_mode<synchronous>, transform_indices = @transform_3, window_bounds = array<i64: 128, 128>}, {pipeline_mode = #tpu.pipeline_mode<synchronous>, transform_indices = @transform_4, window_bounds = array<i64: 128, 128>}, {pipeline_mode = #tpu.pipeline_mode<synchronous>, transform_indices = @transform_5, window_bounds = array<i64: 4, 128>}, {transform_indices = @transform_6, window_bounds = array<i64: 16, 128>}, {transform_indices = @transform_7, window_bounds = array<i64: 16, 128>}]} {
    %c0 = arith.constant 0 : index
    %c0_0 = arith.constant 0 : index
    %0 = vector.load %arg1[%c0, %c0_0] : memref<16x128xbf16, #tpu.memory_space<vmem>>, vector<16x128xbf16>
    %c0_1 = arith.constant 0 : index
    %c0_2 = arith.constant 0 : index
    %1 = vector.load %arg6[%c0_1, %c0_2] : memref<4x128xf32, #tpu.memory_space<vmem>>, vector<1x128xf32>
    %c1 = arith.constant 1 : index
    %c0_3 = arith.constant 0 : index
    %2 = vector.load %arg6[%c1, %c0_3] : memref<4x128xf32, #tpu.memory_space<vmem>>, vector<1x128xf32>
    %c2 = arith.constant 2 : index
    %c0_4 = arith.constant 0 : index
    %3 = vector.load %arg6[%c2, %c0_4] : memref<4x128xf32, #tpu.memory_space<vmem>>, vector<1x128xf32>
    %c3 = arith.constant 3 : index
    %c0_5 = arith.constant 0 : index
    %4 = vector.load %arg6[%c3, %c0_5] : memref<4x128xf32, #tpu.memory_space<vmem>>, vector<1x128xf32>
    %c0_6 = arith.constant 0 : index
    %c0_7 = arith.constant 0 : index
    %5 = vector.load %arg2[%c0_6, %c0_7] : memref<128x128xbf16, #tpu.memory_space<vmem>>, vector<128x128xbf16>
    %cst = arith.constant dense<0.000000e+00> : vector<16x128xf32>
    %6 = tpu.matmul %0, %5, %cst {dimension_numbers = #tpu.dot_dimension_numbers<[1], [0], [0], [1], [0, 0, 1, 1], [], []>} : vector<16x128xbf16>, vector<128x128xbf16>, vector<16x128xf32> -> vector<16x128xf32>
    %7 = vector.broadcast %1 : vector<1x128xf32> to vector<16x128xf32>
    %8 = arith.addf %6, %7 : vector<16x128xf32>
    %cst_8 = arith.constant 5.000000e-01 : f32
    %9 = vector.broadcast %cst_8 : f32 to vector<16x128xf32>
    %10 = arith.mulf %9, %8 : vector<16x128xf32>
    %11 = math.tanh %10 : vector<16x128xf32>
    %cst_9 = arith.constant 5.000000e-01 : f32
    %12 = vector.broadcast %cst_9 : f32 to vector<16x128xf32>
    %13 = arith.mulf %12, %11 : vector<16x128xf32>
    %cst_10 = arith.constant 5.000000e-01 : f32
    %14 = vector.broadcast %cst_10 : f32 to vector<16x128xf32>
    %15 = arith.addf %13, %14 : vector<16x128xf32>
    %16 = arith.truncf %15 : vector<16x128xf32> to vector<16x128xbf16>
    %c0_11 = arith.constant 0 : index
    %c0_12 = arith.constant 0 : index
    %17 = vector.load %arg3[%c0_11, %c0_12] : memref<128x128xbf16, #tpu.memory_space<vmem>>, vector<128x128xbf16>
    %cst_13 = arith.constant dense<0.000000e+00> : vector<16x128xf32>
    %18 = tpu.matmul %16, %17, %cst_13 {dimension_numbers = #tpu.dot_dimension_numbers<[1], [0], [0], [1], [0, 0, 1, 1], [], []>} : vector<16x128xbf16>, vector<128x128xbf16>, vector<16x128xf32> -> vector<16x128xf32>
    %19 = vector.broadcast %2 : vector<1x128xf32> to vector<16x128xf32>
    %20 = arith.addf %18, %19 : vector<16x128xf32>
    %cst_14 = arith.constant 5.000000e-01 : f32
    %21 = vector.broadcast %cst_14 : f32 to vector<16x128xf32>
    %22 = arith.mulf %21, %20 : vector<16x128xf32>
    %23 = math.tanh %22 : vector<16x128xf32>
    %cst_15 = arith.constant 5.000000e-01 : f32
    %24 = vector.broadcast %cst_15 : f32 to vector<16x128xf32>
    %25 = arith.mulf %24, %23 : vector<16x128xf32>
    %cst_16 = arith.constant 5.000000e-01 : f32
    %26 = vector.broadcast %cst_16 : f32 to vector<16x128xf32>
    %27 = arith.addf %25, %26 : vector<16x128xf32>
    %28 = arith.truncf %27 : vector<16x128xf32> to vector<16x128xbf16>
    %c0_17 = arith.constant 0 : index
    %c0_18 = arith.constant 0 : index
    %29 = vector.load %arg4[%c0_17, %c0_18] : memref<128x128xbf16, #tpu.memory_space<vmem>>, vector<128x128xbf16>
    %cst_19 = arith.constant dense<0.000000e+00> : vector<16x128xf32>
    %30 = tpu.matmul %28, %29, %cst_19 {dimension_numbers = #tpu.dot_dimension_numbers<[1], [0], [0], [1], [0, 0, 1, 1], [], []>} : vector<16x128xbf16>, vector<128x128xbf16>, vector<16x128xf32> -> vector<16x128xf32>
    %31 = vector.broadcast %3 : vector<1x128xf32> to vector<16x128xf32>
    %32 = arith.addf %30, %31 : vector<16x128xf32>
    %cst_20 = arith.constant 5.000000e-01 : f32
    %33 = vector.broadcast %cst_20 : f32 to vector<16x128xf32>
    %34 = arith.mulf %33, %32 : vector<16x128xf32>
    %35 = math.tanh %34 : vector<16x128xf32>
    %cst_21 = arith.constant 5.000000e-01 : f32
    %36 = vector.broadcast %cst_21 : f32 to vector<16x128xf32>
    %37 = arith.mulf %36, %35 : vector<16x128xf32>
    %cst_22 = arith.constant 5.000000e-01 : f32
    %38 = vector.broadcast %cst_22 : f32 to vector<16x128xf32>
    %39 = arith.addf %37, %38 : vector<16x128xf32>
    %40 = arith.truncf %39 : vector<16x128xf32> to vector<16x128xbf16>
    %c0_23 = arith.constant 0 : index
    %c0_24 = arith.constant 0 : index
    %41 = vector.load %arg5[%c0_23, %c0_24] : memref<128x128xbf16, #tpu.memory_space<vmem>>, vector<128x128xbf16>
    %cst_25 = arith.constant dense<0.000000e+00> : vector<16x128xf32>
    %42 = tpu.matmul %40, %41, %cst_25 {dimension_numbers = #tpu.dot_dimension_numbers<[1], [0], [0], [1], [0, 0, 1, 1], [], []>} : vector<16x128xbf16>, vector<128x128xbf16>, vector<16x128xf32> -> vector<16x128xf32>
    %43 = vector.broadcast %4 : vector<1x128xf32> to vector<16x128xf32>
    %44 = arith.addf %42, %43 : vector<16x128xf32>
    %cst_26 = arith.constant 5.000000e-01 : f32
    %45 = vector.broadcast %cst_26 : f32 to vector<16x128xf32>
    %46 = arith.mulf %45, %44 : vector<16x128xf32>
    %47 = math.tanh %46 : vector<16x128xf32>
    %cst_27 = arith.constant 5.000000e-01 : f32
    %48 = vector.broadcast %cst_27 : f32 to vector<16x128xf32>
    %49 = arith.mulf %48, %47 : vector<16x128xf32>
    %cst_28 = arith.constant 5.000000e-01 : f32
    %50 = vector.broadcast %cst_28 : f32 to vector<16x128xf32>
    %51 = arith.addf %49, %50 : vector<16x128xf32>
    %c0_29 = arith.constant 0 : index
    %c0_30 = arith.constant 0 : index
    %52 = vector.load %arg7[%c0_29, %c0_30] : memref<16x128xf32, #tpu.memory_space<vmem>>, vector<16x128xf32>
    tpu.vector_store %arg7[%c0_29, %c0_30], %27 {strides = array<i32>} : memref<16x128xf32, #tpu.memory_space<vmem>>, vector<16x128xf32>,
    %c0_31 = arith.constant 0 : index
    %c0_32 = arith.constant 0 : index
    %53 = vector.load %arg8[%c0_31, %c0_32] : memref<16x128xf32, #tpu.memory_space<vmem>>, vector<16x128xf32>
    tpu.vector_store %arg8[%c0_31, %c0_32], %51 {strides = array<i32>} : memref<16x128xf32, #tpu.memory_space<vmem>>, vector<16x128xf32>,
    return
  }
  func.func @transform_0(%arg0: i32) -> (i32, i32) {
    %c0_i32 = arith.constant 0 : i32
    %c0_i32_0 = arith.constant 0 : i32
    return %arg0, %c0_i32 : i32, i32
  }
  func.func @transform_1(%arg0: i32) -> (i32, i32) {
    %c0_i32 = arith.constant 0 : i32
    %c0_i32_0 = arith.constant 0 : i32
    %c0_i32_1 = arith.constant 0 : i32
    return %c0_i32, %c0_i32_0 : i32, i32
  }
  func.func @transform_2(%arg0: i32) -> (i32, i32) {
    %c0_i32 = arith.constant 0 : i32
    %c0_i32_0 = arith.constant 0 : i32
    %c0_i32_1 = arith.constant 0 : i32
    return %c0_i32, %c0_i32_0 : i32, i32
  }
  func.func @transform_3(%arg0: i32) -> (i32, i32) {
    %c0_i32 = arith.constant 0 : i32
    %c0_i32_0 = arith.constant 0 : i32
    %c0_i32_1 = arith.constant 0 : i32
    return %c0_i32, %c0_i32_0 : i32, i32
  }
  func.func @transform_4(%arg0: i32) -> (i32, i32) {
    %c0_i32 = arith.constant 0 : i32
    %c0_i32_0 = arith.constant 0 : i32
    %c0_i32_1 = arith.constant 0 : i32
    return %c0_i32, %c0_i32_0 : i32, i32
  }
  func.func @transform_5(%arg0: i32) -> (i32, i32) {
    %c0_i32 = arith.constant 0 : i32
    %c0_i32_0 = arith.constant 0 : i32
    %c0_i32_1 = arith.constant 0 : i32
    return %c0_i32, %c0_i32_0 : i32, i32
  }
  func.func @transform_6(%arg0: i32) -> (i32, i32) {
    %c0_i32 = arith.constant 0 : i32
    %c0_i32_0 = arith.constant 0 : i32
    return %arg0, %c0_i32 : i32, i32
  }
  func.func @transform_7(%arg0: i32) -> (i32, i32) {
    %c0_i32 = arith.constant 0 : i32
    %c0_i32_0 = arith.constant 0 : i32
    return %arg0, %c0_i32 : i32, i32
  }
}

module attributes {stable_mosaic.version = 11 : i64} {
  func.func @_autoencoder_kernel(%arg0: i32, %arg1: memref<16x128xbf16, #tpu.memory_space<vmem>>, %arg2: memref<128x128xbf16, #tpu.memory_space<vmem>>, %arg3: memref<128x128xbf16, #tpu.memory_space<vmem>>, %arg4: memref<128x128xbf16, #tpu.memory_space<vmem>>, %arg5: memref<128x128xbf16, #tpu.memory_space<vmem>>, %arg6: memref<4x128xf32, #tpu.memory_space<vmem>>, %arg7: memref<16x128xf32, #tpu.memory_space<vmem>>, %arg8: memref<16x128xf32, #tpu.memory_space<vmem>>) attributes {dimension_semantics = [#tpu.dimension_semantics<parallel>], iteration_bounds = array<i64: 1>, scalar_prefetch = 0 : i64, scratch_operands = 0 : i64, tpu.core_type = #tpu.core_type<tc>, window_params = [{transform_indices = @transform_0, window_bounds = array<i64: 16, 128>}, {pipeline_mode = #tpu.pipeline_mode<synchronous>, transform_indices = @transform_1, window_bounds = array<i64: 128, 128>}, {pipeline_mode = #tpu.pipeline_mode<synchronous>, transform_indices = @transform_2, window_bounds = array<i64: 128, 128>}, {pipeline_mode = #tpu.pipeline_mode<synchronous>, transform_indices = @transform_3, window_bounds = array<i64: 128, 128>}, {pipeline_mode = #tpu.pipeline_mode<synchronous>, transform_indices = @transform_4, window_bounds = array<i64: 128, 128>}, {pipeline_mode = #tpu.pipeline_mode<synchronous>, transform_indices = @transform_5, window_bounds = array<i64: 4, 128>}, {transform_indices = @transform_6, window_bounds = array<i64: 16, 128>}, {transform_indices = @transform_7, window_bounds = array<i64: 16, 128>}]} {
    %c0 = arith.constant 0 : index
    %c0_0 = arith.constant 0 : index
    %0 = vector.load %arg1[%c0, %c0_0] : memref<16x128xbf16, #tpu.memory_space<vmem>>, vector<16x128xbf16>
    %c0_1 = arith.constant 0 : index
    %c0_2 = arith.constant 0 : index
    %1 = vector.load %arg6[%c0_1, %c0_2] : memref<4x128xf32, #tpu.memory_space<vmem>>, vector<1x128xf32>
    %c1 = arith.constant 1 : index
    %c0_3 = arith.constant 0 : index
    %2 = vector.load %arg6[%c1, %c0_3] : memref<4x128xf32, #tpu.memory_space<vmem>>, vector<1x128xf32>
    %c2 = arith.constant 2 : index
    %c0_4 = arith.constant 0 : index
    %3 = vector.load %arg6[%c2, %c0_4] : memref<4x128xf32, #tpu.memory_space<vmem>>, vector<1x128xf32>
    %c3 = arith.constant 3 : index
    %c0_5 = arith.constant 0 : index
    %4 = vector.load %arg6[%c3, %c0_5] : memref<4x128xf32, #tpu.memory_space<vmem>>, vector<1x128xf32>
    %c0_6 = arith.constant 0 : index
    %c0_7 = arith.constant 0 : index
    %5 = vector.load %arg2[%c0_6, %c0_7] : memref<128x128xbf16, #tpu.memory_space<vmem>>, vector<128x128xbf16>
    %cst = arith.constant dense<0.000000e+00> : vector<16x128xf32>
    %6 = tpu.matmul %0, %5, %cst {dimension_numbers = #tpu.dot_dimension_numbers<[1], [0], [0], [1], [0, 0, 1, 1], [], []>} : vector<16x128xbf16>, vector<128x128xbf16>, vector<16x128xf32> -> vector<16x128xf32>
    %7 = vector.broadcast %1 : vector<1x128xf32> to vector<16x128xf32>
    %8 = arith.addf %6, %7 : vector<16x128xf32>
    %cst_8 = arith.constant 5.000000e-01 : f32
    %9 = vector.broadcast %cst_8 : f32 to vector<16x128xf32>
    %10 = arith.mulf %9, %8 : vector<16x128xf32>
    %11 = math.tanh %10 : vector<16x128xf32>
    %cst_9 = arith.constant 5.000000e-01 : f32
    %12 = vector.broadcast %cst_9 : f32 to vector<16x128xf32>
    %13 = arith.mulf %12, %11 : vector<16x128xf32>
    %cst_10 = arith.constant 5.000000e-01 : f32
    %14 = vector.broadcast %cst_10 : f32 to vector<16x128xf32>
    %15 = arith.addf %13, %14 : vector<16x128xf32>
    %16 = arith.truncf %15 : vector<16x128xf32> to vector<16x128xbf16>
    %c0_11 = arith.constant 0 : index
    %c0_12 = arith.constant 0 : index
    %17 = vector.load %arg3[%c0_11, %c0_12] : memref<128x128xbf16, #tpu.memory_space<vmem>>, vector<128x128xbf16>
    %cst_13 = arith.constant dense<0.000000e+00> : vector<16x128xf32>
    %18 = tpu.matmul %16, %17, %cst_13 {dimension_numbers = #tpu.dot_dimension_numbers<[1], [0], [0], [1], [0, 0, 1, 1], [], []>} : vector<16x128xbf16>, vector<128x128xbf16>, vector<16x128xf32> -> vector<16x128xf32>
    %19 = vector.broadcast %2 : vector<1x128xf32> to vector<16x128xf32>
    %20 = arith.addf %18, %19 : vector<16x128xf32>
    %cst_14 = arith.constant 5.000000e-01 : f32
    %21 = vector.broadcast %cst_14 : f32 to vector<16x128xf32>
    %22 = arith.mulf %21, %20 : vector<16x128xf32>
    %23 = math.tanh %22 : vector<16x128xf32>
    %cst_15 = arith.constant 5.000000e-01 : f32
    %24 = vector.broadcast %cst_15 : f32 to vector<16x128xf32>
    %25 = arith.mulf %24, %23 : vector<16x128xf32>
    %cst_16 = arith.constant 5.000000e-01 : f32
    %26 = vector.broadcast %cst_16 : f32 to vector<16x128xf32>
    %27 = arith.addf %25, %26 : vector<16x128xf32>
    %28 = arith.truncf %27 : vector<16x128xf32> to vector<16x128xbf16>
    %c0_17 = arith.constant 0 : index
    %c0_18 = arith.constant 0 : index
    %29 = vector.load %arg4[%c0_17, %c0_18] : memref<128x128xbf16, #tpu.memory_space<vmem>>, vector<128x128xbf16>
    %cst_19 = arith.constant dense<0.000000e+00> : vector<16x128xf32>
    %30 = tpu.matmul %28, %29, %cst_19 {dimension_numbers = #tpu.dot_dimension_numbers<[1], [0], [0], [1], [0, 0, 1, 1], [], []>} : vector<16x128xbf16>, vector<128x128xbf16>, vector<16x128xf32> -> vector<16x128xf32>
    %31 = vector.broadcast %3 : vector<1x128xf32> to vector<16x128xf32>
    %32 = arith.addf %30, %31 : vector<16x128xf32>
    %cst_20 = arith.constant 5.000000e-01 : f32
    %33 = vector.broadcast %cst_20 : f32 to vector<16x128xf32>
    %34 = arith.mulf %33, %32 : vector<16x128xf32>
    %35 = math.tanh %34 : vector<16x128xf32>
    %cst_21 = arith.constant 5.000000e-01 : f32
    %36 = vector.broadcast %cst_21 : f32 to vector<16x128xf32>
    %37 = arith.mulf %36, %35 : vector<16x128xf32>
    %cst_22 = arith.constant 5.000000e-01 : f32
    %38 = vector.broadcast %cst_22 : f32 to vector<16x128xf32>
    %39 = arith.addf %37, %38 : vector<16x128xf32>
    %40 = arith.truncf %39 : vector<16x128xf32> to vector<16x128xbf16>
    %c0_23 = arith.constant 0 : index
    %c0_24 = arith.constant 0 : index
    %41 = vector.load %arg5[%c0_23, %c0_24] : memref<128x128xbf16, #tpu.memory_space<vmem>>, vector<128x128xbf16>
    %cst_25 = arith.constant dense<0.000000e+00> : vector<16x128xf32>
    %42 = tpu.matmul %40, %41, %cst_25 {dimension_numbers = #tpu.dot_dimension_numbers<[1], [0], [0], [1], [0, 0, 1, 1], [], []>} : vector<16x128xbf16>, vector<128x128xbf16>, vector<16x128xf32> -> vector<16x128xf32>
    %43 = vector.broadcast %4 : vector<1x128xf32> to vector<16x128xf32>
    %44 = arith.addf %42, %43 : vector<16x128xf32>
    %cst_26 = arith.constant 5.000000e-01 : f32
    %45 = vector.broadcast %cst_26 : f32 to vector<16x128xf32>
    %46 = arith.mulf %45, %44 : vector<16x128xf32>
    %47 = math.tanh %46 : vector<16x128xf32>
    %cst_27 = arith.constant 5.000000e-01 : f32
    %48 = vector.broadcast %cst_27 : f32 to vector<16x128xf32>
    %49 = arith.mulf %48, %47 : vector<16x128xf32>
    %cst_28 = arith.constant 5.000000e-01 : f32
    %50 = vector.broadcast %cst_28 : f32 to vector<16x128xf32>
    %51 = arith.addf %49, %50 : vector<16x128xf32>
    %c0_29 = arith.constant 0 : index
    %c0_30 = arith.constant 0 : index
    %52 = vector.load %arg7[%c0_29, %c0_30] : memref<16x128xf32, #tpu.memory_space<vmem>>, vector<16x128xf32>
    tpu.vector_store %arg7[%c0_29, %c0_30], %27 {strides = array<i32>} : memref<16x128xf32, #tpu.memory_space<vmem>>, vector<16x128xf32>,
    %c0_31 = arith.constant 0 : index
    %c0_32 = arith.constant 0 : index
    %53 = vector.load %arg8[%c0_31, %c0_32] : memref<16x128xf32, #tpu.memory_space<vmem>>, vector<16x128xf32>
    tpu.vector_store %arg8[%c0_31, %c0_32], %51 {strides = array<i32>} : memref<16x128xf32, #tpu.memory_space<vmem>>, vector<16x128xf32>,
    return
  }
  func.func @transform_0(%arg0: i32) -> (i32, i32) {
    %c0_i32 = arith.constant 0 : i32
    %c0_i32_0 = arith.constant 0 : i32
    return %arg0, %c0_i32 : i32, i32
  }
  func.func @transform_1(%arg0: i32) -> (i32, i32) {
    %c0_i32 = arith.constant 0 : i32
    %c0_i32_0 = arith.constant 0 : i32
    %c0_i32_1 = arith.constant 0 : i32
    return %c0_i32, %c0_i32_0 : i32, i32
  }
  func.func @transform_2(%arg0: i32) -> (i32, i32) {
    %c0_i32 = arith.constant 0 : i32
    %c0_i32_0 = arith.constant 0 : i32
    %c0_i32_1 = arith.constant 0 : i32
    return %c0_i32, %c0_i32_0 : i32, i32
  }
  func.func @transform_3(%arg0: i32) -> (i32, i32) {
    %c0_i32 = arith.constant 0 : i32
    %c0_i32_0 = arith.constant 0 : i32
    %c0_i32_1 = arith.constant 0 : i32
    return %c0_i32, %c0_i32_0 : i32, i32
  }
  func.func @transform_4(%arg0: i32) -> (i32, i32) {
    %c0_i32 = arith.constant 0 : i32
    %c0_i32_0 = arith.constant 0 : i32
    %c0_i32_1 = arith.constant 0 : i32
    return %c0_i32, %c0_i32_0 : i32, i32
  }
  func.func @transform_5(%arg0: i32) -> (i32, i32) {
    %c0_i32 = arith.constant 0 : i32
    %c0_i32_0 = arith.constant 0 : i32
    %c0_i32_1 = arith.constant 0 : i32
    return %c0_i32, %c0_i32_0 : i32, i32
  }
  func.func @transform_6(%arg0: i32) -> (i32, i32) {
    %c0_i32 = arith.constant 0 : i32
    %c0_i32_0 = arith.constant 0 : i32
    return %arg0, %c0_i32 : i32, i32
  }
  func.func @transform_7(%arg0: i32) -> (i32, i32) {
    %c0_i32 = arith.constant 0 : i32
    %c0_i32_0 = arith.constant 0 : i32
    return %arg0, %c0_i32 : i32, i32
  }
}

</mosaic_0001>

<llo_original>
// kernel: autoencoder_forward.1
$region0: #{autoencoder_forward.1}
  #allocation0 [shape = 'u32[]', space=smem, size = 0x4, offset = 0x4, fixed_abs, tag = 'smem constant byte address 0x4 - core index']
  #allocation1 [shape = 'u32[144,128]{1,0:T(1,128)}', space=vmem, size = 0x12000, scoped, tag = 'internal scratch']
  %s0 = inlined_call_operand.vmem [shape: bf16[16,128], index: 0, kind: input, shape index: {}]
  %s1 = inlined_call_operand.hbm [shape: bf16[128,128], index: 1, kind: input, shape index: {}]
  %s2 = inlined_call_operand.hbm [shape: bf16[128,128], index: 2, kind: input, shape index: {}]
  %s3 = inlined_call_operand.hbm [shape: bf16[128,128], index: 3, kind: input, shape index: {}]
  %s4 = inlined_call_operand.hbm [shape: bf16[128,128], index: 4, kind: input, shape index: {}]
  %s5 = inlined_call_operand.vmem [shape: f32[4,128], index: 5, kind: input, shape index: {}]
  %s6 = inlined_call_operand.vmem [shape: f32[16,128], index: 6, kind: output, shape index: {0}]
  %s7 = inlined_call_operand.vmem [shape: f32[16,128], index: 7, kind: output, shape index: {1}]
  %8 = xla_tuple %s6, %s7
  %s9 = sld [smem:[#allocation0]]
  $region58: #{autoencoder_forward.1} parent=0
    _
  %s11 = ssub.s32 1, %s9
  %s12 = scalar_select 0, %s11, %s9
  $region1: #{autoencoder_forward.1} parent=0
    #allocation2 [shape = 'u8[32768]{0}', space=vmem, size = 0x8000, scoped, tag = 'input window, operand 1, single buffered']
    #allocation3 [shape = 's32[1]{0}', space=sflag, size = 0x4, scoped, tag = 'scoped memory for autoencoder_forward.1']
    #allocation4 [shape = 'u8[32768]{0}', space=vmem, size = 0x8000, scoped, tag = 'input window, operand 2, single buffered']
    #allocation5 [shape = 's32[1]{0}', space=sflag, size = 0x4, scoped, tag = 'scoped memory for autoencoder_forward.1']
    #allocation6 [shape = 'u8[32768]{0}', space=vmem, size = 0x8000, scoped, tag = 'input window, operand 3, single buffered']
    #allocation7 [shape = 'u8[32768]{0}', space=vmem, size = 0x8000, scoped, tag = 'input window, operand 4, single buffered']
    #allocation8 [shape = 's32[1]{0}', space=sflag, size = 0x4, scoped, tag = 'scoped memory for autoencoder_forward.1']
    %13 = vsyncpa [#allocation3], 0
    %14 = vsyncpa [#allocation5], 0
    %15 = vsyncpa [#allocation8], 0
    // Predicated region
    $region2: #{autoencoder_forward.1} parent=1 // pred_check
      _
    $region3: #{autoencoder_forward.1} parent=1 // pred_check_branch
      %17 = sbr.rel (0) target = $region5
    $region4: #{autoencoder_forward.1} parent=1 // pred_region
      _
    $region5: #{autoencoder_forward.1} parent=1 // pred_fallthru
      _
    // Predicated region
    $region6: #{autoencoder_forward.1} parent=1 // pred_check
      _
    $region7: #{autoencoder_forward.1} parent=1 // pred_check_branch
      %19 = sbr.rel (0) target = $region9
    $region8: #{autoencoder_forward.1} parent=1 // pred_region
      %s21 = ssub.s32 1024, 1024
      %22 = vsyncadd [#allocation3], %s21
      %s23 = sshll.u32 [#allocation2], 4
      %s24 = int_to_ptr.vmem [resolvable:$true] %s23
      %29 = dma.hbm_to_vmem [thread:$0]  %s1, 1024, %s24, [#allocation3], 64, 64, 4
    $region9: #{autoencoder_forward.1} parent=1 // pred_fallthru
      _
    // Predicated region
    $region10: #{autoencoder_forward.1} parent=1 // pred_check
      _
    $region11: #{autoencoder_forward.1} parent=1 // pred_check_branch
      %31 = sbr.rel (0) target = $region13
    $region12: #{autoencoder_forward.1} parent=1 // pred_region
      %s33 = ssub.s32 1024, 1024
      %34 = vsyncadd [#allocation5], %s33
      %s35 = sshll.u32 [#allocation4], 4
      %s36 = int_to_ptr.vmem [resolvable:$true] %s35
      %41 = dma.hbm_to_vmem [thread:$0]  %s2, 1024, %s36, [#allocation5], 64, 64, 4
    $region13: #{autoencoder_forward.1} parent=1 // pred_fallthru
      _
    // Predicated region
    $region14: #{autoencoder_forward.1} parent=1 // pred_check
      _
    $region15: #{autoencoder_forward.1} parent=1 // pred_check_branch
      %43 = sbr.rel (0) target = $region17
    $region16: #{autoencoder_forward.1} parent=1 // pred_region
      %s45 = ssub.s32 1024, 1024
      %46 = vsyncadd [#allocation5], %s45
      %s47 = sshll.u32 [#allocation6], 4
      %s48 = int_to_ptr.vmem [resolvable:$true] %s47
      %53 = dma.hbm_to_vmem [thread:$0]  %s3, 1024, %s48, [#allocation5], 64, 64, 4
    $region17: #{autoencoder_forward.1} parent=1 // pred_fallthru
      _
    // Predicated region
    $region18: #{autoencoder_forward.1} parent=1 // pred_check
      _
    $region19: #{autoencoder_forward.1} parent=1 // pred_check_branch
      %55 = sbr.rel (0) target = $region21
    $region20: #{autoencoder_forward.1} parent=1 // pred_region
      %s57 = ssub.s32 1024, 1024
      %58 = vsyncadd [#allocation8], %s57
      %s59 = sshll.u32 [#allocation7], 4
      %s60 = int_to_ptr.vmem [resolvable:$true] %s59
      %65 = dma.hbm_to_vmem [thread:$0]  %s4, 1024, %s60, [#allocation8], 64, 64, 4
    $region21: #{autoencoder_forward.1} parent=1 // pred_fallthru
      _
    // Predicated region
    $region22: #{autoencoder_forward.1} parent=1 // pred_check
      _
    $region23: #{autoencoder_forward.1} parent=1 // pred_check_branch
      %67 = sbr.rel (0) target = $region25
    $region24: #{autoencoder_forward.1} parent=1 // pred_region
      _
    $region25: #{autoencoder_forward.1} parent=1 // pred_fallthru
      _
    // Predicated region
    $region26: #{autoencoder_forward.1} parent=1 // pred_check
      _
    $region27: #{autoencoder_forward.1} parent=1 // pred_check_branch
      %69 = sbr.rel (0) target = $region29
    $region28: #{autoencoder_forward.1} parent=1 // pred_region
      %70 = dma.done [#allocation3], 1024
    $region29: #{autoencoder_forward.1} parent=1 // pred_fallthru
      _
    // Predicated region
    $region30: #{autoencoder_forward.1} parent=1 // pred_check
      _
    $region31: #{autoencoder_forward.1} parent=1 // pred_check_branch
      %72 = sbr.rel (0) target = $region33
    $region32: #{autoencoder_forward.1} parent=1 // pred_region
      %73 = dma.done [#allocation5], 1024
    $region33: #{autoencoder_forward.1} parent=1 // pred_fallthru
      _
    // Predicated region
    $region34: #{autoencoder_forward.1} parent=1 // pred_check
      _
    $region35: #{autoencoder_forward.1} parent=1 // pred_check_branch
      %75 = sbr.rel (0) target = $region37
    $region36: #{autoencoder_forward.1} parent=1 // pred_region
      %76 = dma.done [#allocation5], 1024
    $region37: #{autoencoder_forward.1} parent=1 // pred_fallthru
      _
    // Predicated region
    $region38: #{autoencoder_forward.1} parent=1 // pred_check
      _
    $region39: #{autoencoder_forward.1} parent=1 // pred_check_branch
      %78 = sbr.rel (0) target = $region41
    $region40: #{autoencoder_forward.1} parent=1 // pred_region
      %79 = dma.done [#allocation8], 1024
    $region41: #{autoencoder_forward.1} parent=1 // pred_fallthru
      _
    %v81 = vld [vmem:[%s0] sm:$0xf]
    %v82 = vld [vmem:[%s0 + $0x4] sm:$0xf]
    %v83 = vld [vmem:[%s5] sm:$0x1]
    %v84 = vld [vmem:[%s5 + $0x1] sm:$0x1]
    %v85 = vld [vmem:[%s5 + $0x2] sm:$0x1]
    %v86 = vld [vmem:[%s5 + $0x3] sm:$0x1]
    %v87 = vld [vmem:[#allocation2] sm:$0xf]
    %v88 = vld [vmem:[#allocation2 + $0x4] sm:$0xf]
    %v89 = vld [vmem:[#allocation2 + $0x8] sm:$0xf]
    %v90 = vld [vmem:[#allocation2 + $0xc] sm:$0xf]
    %v91 = vld [vmem:[#allocation2 + $0x10] sm:$0xf]
    %v92 = vld [vmem:[#allocation2 + $0x14] sm:$0xf]
    %v93 = vld [vmem:[#allocation2 + $0x18] sm:$0xf]
    %v94 = vld [vmem:[#allocation2 + $0x1c] sm:$0xf]
    %v95 = vld [vmem:[#allocation2 + $0x20] sm:$0xf]
    %v96 = vld [vmem:[#allocation2 + $0x24] sm:$0xf]
    %v97 = vld [vmem:[#allocation2 + $0x28] sm:$0xf]
    %v98 = vld [vmem:[#allocation2 + $0x2c] sm:$0xf]
    %v99 = vld [vmem:[#allocation2 + $0x30] sm:$0xf]
    %v100 = vld [vmem:[#allocation2 + $0x34] sm:$0xf]
    %v101 = vld [vmem:[#allocation2 + $0x38] sm:$0xf]
    %v102 = vld [vmem:[#allocation2 + $0x3c] sm:$0xf]
    %v103 = vlaneseq
    %v104 = vshrl.u32 %v103, 7
    %v105 = vsub.s32 0, %v104
    %v106 = vrot.slane %v83, %v105
    %v109 = vunpack.c.l.b16 %v81
    %v110 = vunpack.c.l.b16 %v82
    %v111 = vpack.c.b16 %v110, %v109
    %v129 = vunpack.c.l.b16 %v87
    %v130 = vunpack.c.l.b16 %v88
    %v131 = vunpack.c.l.b16 %v89
    %v132 = vunpack.c.l.b16 %v90
    %v133 = vunpack.c.l.b16 %v91
    %v134 = vunpack.c.l.b16 %v92
    %v135 = vunpack.c.l.b16 %v93
    %v136 = vunpack.c.l.b16 %v94
    %v137 = vunpack.c.l.b16 %v95
    %v138 = vunpack.c.l.b16 %v96
    %v139 = vunpack.c.l.b16 %v97
    %v140 = vunpack.c.l.b16 %v98
    %v141 = vunpack.c.l.b16 %v99
    %v142 = vunpack.c.l.b16 %v100
    %v143 = vunpack.c.l.b16 %v101
    %v144 = vunpack.c.l.b16 %v102
    %v145 = vpack.c.b16 %v130, %v129
    %v146 = vpack.c.b16 %v132, %v131
    %v147 = vpack.c.b16 %v134, %v133
    %v148 = vpack.c.b16 %v136, %v135
    %v149 = vpack.c.b16 %v138, %v137
    %v150 = vpack.c.b16 %v140, %v139
    %v151 = vpack.c.b16 %v142, %v141
    %v152 = vpack.c.b16 %v144, %v143
    %161 = vmatprep.subr.bf16.mxu0 0
    %162 = vmatpush1.bf16.msra.mxu0 %v145
    %163 = vmatprep.subr.bf16.mxu0 0
    %164 = vmatpush1.bf16.msra.mxu0 %v146
    %165 = vmatprep.subr.bf16.mxu0 0
    %166 = vmatpush1.bf16.msra.mxu0 %v147
    %167 = vmatprep.subr.bf16.mxu0 0
    %168 = vmatpush1.bf16.msra.mxu0 %v148
    %169 = vmatprep.subr.bf16.mxu0 0
    %170 = vmatpush1.bf16.msra.mxu0 %v149
    %171 = vmatprep.subr.bf16.mxu0 0
    %172 = vmatpush1.bf16.msra.mxu0 %v150
    %173 = vmatprep.subr.bf16.mxu0 0
    %174 = vmatpush1.bf16.msra.mxu0 %v151
    %175 = vmatprep.subr.bf16.mxu0 0
    %176 = vmatpush1.bf16.msra.mxu0 %v152
    %177 = vmatprep.subr.bf16.mxu0 0
    %178 = vmatpush1.bf16.msra.mxu0 0
    %179 = vmatprep.subr.bf16.mxu0 0
    %180 = vmatpush1.bf16.msra.mxu0 0
    %181 = vmatprep.subr.bf16.mxu0 0
    %182 = vmatpush1.bf16.msra.mxu0 0
    %183 = vmatprep.subr.bf16.mxu0 0
    %184 = vmatpush1.bf16.msra.mxu0 0
    %185 = vmatprep.subr.bf16.mxu0 0
    %186 = vmatpush1.bf16.msra.mxu0 0
    %187 = vmatprep.subr.bf16.mxu0 0
    %188 = vmatpush1.bf16.msra.mxu0 0
    %189 = vmatprep.subr.bf16.mxu0 0
    %190 = vmatpush1.bf16.msra.mxu0 0
    %191 = vmatprep.subr.bf16.mxu0 0
    %192 = vmatpush1.bf16.msra.mxu0 0
    %193 = vmatprep.mubr.bf16.mxu0 0
    %194 = vmatmul.mubr.bf16.gmra.mrb[0].mxu0 %v111
    %v195 = vpop.f32.mrb[0].mxu0
    %v196 = vadd.f32 %v106, %v195
    %v197 = vpop.f32.mrb[0].mxu0
    %v198 = vpop.f32.mrb[0].mxu0
    %v199 = vadd.f32 %v106, %v198
    %v200 = vpop.f32.mrb[0].mxu0
    %201 = vdwg.mxu0
    %v202 = vmul.f32 %v196, 0.5
    %v203 = vmul.f32 %v199, 0.5
    %v204 = vtanh.pop %v202
    %v205 = vtanh.pop %v203
    %v206 = vmul.f32 %v204, 0.5
    %v207 = vmul.f32 %v205, 0.5
    %v208 = vadd.f32 %v206, 0.5
    %v209 = vadd.f32 %v207, 0.5
    %v210 = vpack.c.bf16 %v209, %v208
    %v211 = vld [vmem:[#allocation4] sm:$0xf]
    %v212 = vld [vmem:[#allocation4 + $0x4] sm:$0xf]
    %v213 = vld [vmem:[#allocation4 + $0x8] sm:$0xf]
    %v214 = vld [vmem:[#allocation4 + $0xc] sm:$0xf]
    %v215 = vld [vmem:[#allocation4 + $0x10] sm:$0xf]
    %v216 = vld [vmem:[#allocation4 + $0x14] sm:$0xf]
    %v217 = vld [vmem:[#allocation4 + $0x18] sm:$0xf]
    %v218 = vld [vmem:[#allocation4 + $0x1c] sm:$0xf]
    %v219 = vld [vmem:[#allocation4 + $0x20] sm:$0xf]
    %v220 = vld [vmem:[#allocation4 + $0x24] sm:$0xf]
    %v221 = vld [vmem:[#allocation4 + $0x28] sm:$0xf]
    %v222 = vld [vmem:[#allocation4 + $0x2c] sm:$0xf]
    %v223 = vld [vmem:[#allocation4 + $0x30] sm:$0xf]
    %v224 = vld [vmem:[#allocation4 + $0x34] sm:$0xf]
    %v225 = vld [vmem:[#allocation4 + $0x38] sm:$0xf]
    %v226 = vld [vmem:[#allocation4 + $0x3c] sm:$0xf]
    %v227 = vlaneseq
    %v228 = vshrl.u32 %v227, 7
    %v229 = vsub.s32 0, %v228
    %v230 = vrot.slane %v84, %v229
    %v247 = vunpack.c.l.b16 %v211
    %v248 = vunpack.c.l.b16 %v212
    %v249 = vunpack.c.l.b16 %v213
    %v250 = vunpack.c.l.b16 %v214
    %v251 = vunpack.c.l.b16 %v215
    %v252 = vunpack.c.l.b16 %v216
    %v253 = vunpack.c.l.b16 %v217
    %v254 = vunpack.c.l.b16 %v218
    %v255 = vunpack.c.l.b16 %v219
    %v256 = vunpack.c.l.b16 %v220
    %v257 = vunpack.c.l.b16 %v221
    %v258 = vunpack.c.l.b16 %v222
    %v259 = vunpack.c.l.b16 %v223
    %v260 = vunpack.c.l.b16 %v224
    %v261 = vunpack.c.l.b16 %v225
    %v262 = vunpack.c.l.b16 %v226
    %v263 = vpack.c.b16 %v248, %v247
    %v264 = vpack.c.b16 %v250, %v249
    %v265 = vpack.c.b16 %v252, %v251
    %v266 = vpack.c.b16 %v254, %v253
    %v267 = vpack.c.b16 %v256, %v255
    %v268 = vpack.c.b16 %v258, %v257
    %v269 = vpack.c.b16 %v260, %v259
    %v270 = vpack.c.b16 %v262, %v261
    %279 = vmatprep.subr.bf16.mxu0 0
    %280 = vmatpush1.bf16.msra.mxu0 %v263
    %281 = vmatprep.subr.bf16.mxu0 0
    %282 = vmatpush1.bf16.msra.mxu0 %v264
    %283 = vmatprep.subr.bf16.mxu0 0
    %284 = vmatpush1.bf16.msra.mxu0 %v265
    %285 = vmatprep.subr.bf16.mxu0 0
    %286 = vmatpush1.bf16.msra.mxu0 %v266
    %287 = vmatprep.subr.bf16.mxu0 0
    %288 = vmatpush1.bf16.msra.mxu0 %v267
    %289 = vmatprep.subr.bf16.mxu0 0
    %290 = vmatpush1.bf16.msra.mxu0 %v268
    %291 = vmatprep.subr.bf16.mxu0 0
    %292 = vmatpush1.bf16.msra.mxu0 %v269
    %293 = vmatprep.subr.bf16.mxu0 0
    %294 = vmatpush1.bf16.msra.mxu0 %v270
    %295 = vmatprep.subr.bf16.mxu0 0
    %296 = vmatpush1.bf16.msra.mxu0 0
    %297 = vmatprep.subr.bf16.mxu0 0
    %298 = vmatpush1.bf16.msra.mxu0 0
    %299 = vmatprep.subr.bf16.mxu0 0
    %300 = vmatpush1.bf16.msra.mxu0 0
    %301 = vmatprep.subr.bf16.mxu0 0
    %302 = vmatpush1.bf16.msra.mxu0 0
    %303 = vmatprep.subr.bf16.mxu0 0
    %304 = vmatpush1.bf16.msra.mxu0 0
    %305 = vmatprep.subr.bf16.mxu0 0
    %306 = vmatpush1.bf16.msra.mxu0 0
    %307 = vmatprep.subr.bf16.mxu0 0
    %308 = vmatpush1.bf16.msra.mxu0 0
    %309 = vmatprep.subr.bf16.mxu0 0
    %310 = vmatpush1.bf16.msra.mxu0 0
    %311 = vmatprep.mubr.bf16.mxu0 0
    %312 = vmatmul.mubr.bf16.gmra.mrb[0].mxu0 %v210
    %v313 = vpop.f32.mrb[0].mxu0
    %v314 = vadd.f32 %v230, %v313
    %v315 = vpop.f32.mrb[0].mxu0
    %v316 = vpop.f32.mrb[0].mxu0
    %v317 = vadd.f32 %v230, %v316
    %v318 = vpop.f32.mrb[0].mxu0
    %319 = vdwg.mxu0
    %v320 = vmul.f32 %v314, 0.5
    %v321 = vmul.f32 %v317, 0.5
    %v322 = vtanh.pop %v320
    %v323 = vtanh.pop %v321
    %v324 = vmul.f32 %v322, 0.5
    %v325 = vmul.f32 %v323, 0.5
    %v326 = vadd.f32 %v324, 0.5
    %v327 = vadd.f32 %v325, 0.5
    %v328 = vpack.c.bf16 %v327, %v326
    %v329 = vld [vmem:[#allocation6] sm:$0xf]
    %v330 = vld [vmem:[#allocation6 + $0x4] sm:$0xf]
    %v331 = vld [vmem:[#allocation6 + $0x8] sm:$0xf]
    %v332 = vld [vmem:[#allocation6 + $0xc] sm:$0xf]
    %v333 = vld [vmem:[#allocation6 + $0x10] sm:$0xf]
    %v334 = vld [vmem:[#allocation6 + $0x14] sm:$0xf]
    %v335 = vld [vmem:[#allocation6 + $0x18] sm:$0xf]
    %v336 = vld [vmem:[#allocation6 + $0x1c] sm:$0xf]
    %v337 = vld [vmem:[#allocation6 + $0x20] sm:$0xf]
    %v338 = vld [vmem:[#allocation6 + $0x24] sm:$0xf]
    %v339 = vld [vmem:[#allocation6 + $0x28] sm:$0xf]
    %v340 = vld [vmem:[#allocation6 + $0x2c] sm:$0xf]
    %v341 = vld [vmem:[#allocation6 + $0x30] sm:$0xf]
    %v342 = vld [vmem:[#allocation6 + $0x34] sm:$0xf]
    %v343 = vld [vmem:[#allocation6 + $0x38] sm:$0xf]
    %v344 = vld [vmem:[#allocation6 + $0x3c] sm:$0xf]
    %v345 = vlaneseq
    %v346 = vshrl.u32 %v345, 7
    %v347 = vsub.s32 0, %v346
    %v348 = vrot.slane %v85, %v347
    %v365 = vunpack.c.l.b16 %v329
    %v366 = vunpack.c.l.b16 %v330
    %v367 = vunpack.c.l.b16 %v331
    %v368 = vunpack.c.l.b16 %v332
    %v369 = vunpack.c.l.b16 %v333
    %v370 = vunpack.c.l.b16 %v334
    %v371 = vunpack.c.l.b16 %v335
    %v372 = vunpack.c.l.b16 %v336
    %v373 = vunpack.c.l.b16 %v337
    %v374 = vunpack.c.l.b16 %v338
    %v375 = vunpack.c.l.b16 %v339
    %v376 = vunpack.c.l.b16 %v340
    %v377 = vunpack.c.l.b16 %v341
    %v378 = vunpack.c.l.b16 %v342
    %v379 = vunpack.c.l.b16 %v343
    %v380 = vunpack.c.l.b16 %v344
    %v381 = vpack.c.b16 %v366, %v365
    %v382 = vpack.c.b16 %v368, %v367
    %v383 = vpack.c.b16 %v370, %v369
    %v384 = vpack.c.b16 %v372, %v371
    %v385 = vpack.c.b16 %v374, %v373
    %v386 = vpack.c.b16 %v376, %v375
    %v387 = vpack.c.b16 %v378, %v377
    %v388 = vpack.c.b16 %v380, %v379
    %397 = vmatprep.subr.bf16.mxu0 0
    %398 = vmatpush1.bf16.msra.mxu0 %v381
    %399 = vmatprep.subr.bf16.mxu0 0
    %400 = vmatpush1.bf16.msra.mxu0 %v382
    %401 = vmatprep.subr.bf16.mxu0 0
    %402 = vmatpush1.bf16.msra.mxu0 %v383
    %403 = vmatprep.subr.bf16.mxu0 0
    %404 = vmatpush1.bf16.msra.mxu0 %v384
    %405 = vmatprep.subr.bf16.mxu0 0
    %406 = vmatpush1.bf16.msra.mxu0 %v385
    %407 = vmatprep.subr.bf16.mxu0 0
    %408 = vmatpush1.bf16.msra.mxu0 %v386
    %409 = vmatprep.subr.bf16.mxu0 0
    %410 = vmatpush1.bf16.msra.mxu0 %v387
    %411 = vmatprep.subr.bf16.mxu0 0
    %412 = vmatpush1.bf16.msra.mxu0 %v388
    %413 = vmatprep.subr.bf16.mxu0 0
    %414 = vmatpush1.bf16.msra.mxu0 0
    %415 = vmatprep.subr.bf16.mxu0 0
    %416 = vmatpush1.bf16.msra.mxu0 0
    %417 = vmatprep.subr.bf16.mxu0 0
    %418 = vmatpush1.bf16.msra.mxu0 0
    %419 = vmatprep.subr.bf16.mxu0 0
    %420 = vmatpush1.bf16.msra.mxu0 0
    %421 = vmatprep.subr.bf16.mxu0 0
    %422 = vmatpush1.bf16.msra.mxu0 0
    %423 = vmatprep.subr.bf16.mxu0 0
    %424 = vmatpush1.bf16.msra.mxu0 0
    %425 = vmatprep.subr.bf16.mxu0 0
    %426 = vmatpush1.bf16.msra.mxu0 0
    %427 = vmatprep.subr.bf16.mxu0 0
    %428 = vmatpush1.bf16.msra.mxu0 0
    %429 = vmatprep.mubr.bf16.mxu0 0
    %430 = vmatmul.mubr.bf16.gmra.mrb[0].mxu0 %v328
    %v431 = vpop.f32.mrb[0].mxu0
    %v432 = vadd.f32 %v348, %v431
    %v433 = vpop.f32.mrb[0].mxu0
    %v434 = vpop.f32.mrb[0].mxu0
    %v435 = vadd.f32 %v348, %v434
    %v436 = vpop.f32.mrb[0].mxu0
    %437 = vdwg.mxu0
    %v438 = vmul.f32 %v432, 0.5
    %v439 = vmul.f32 %v435, 0.5
    %v440 = vtanh.pop %v438
    %v441 = vtanh.pop %v439
    %v442 = vmul.f32 %v440, 0.5
    %v443 = vmul.f32 %v441, 0.5
    %v444 = vadd.f32 %v442, 0.5
    %v445 = vadd.f32 %v443, 0.5
    %v446 = vpack.c.bf16 %v445, %v444
    %v447 = vld [vmem:[#allocation7] sm:$0xf]
    %v448 = vld [vmem:[#allocation7 + $0x4] sm:$0xf]
    %v449 = vld [vmem:[#allocation7 + $0x8] sm:$0xf]
    %v450 = vld [vmem:[#allocation7 + $0xc] sm:$0xf]
    %v451 = vld [vmem:[#allocation7 + $0x10] sm:$0xf]
    %v452 = vld [vmem:[#allocation7 + $0x14] sm:$0xf]
    %v453 = vld [vmem:[#allocation7 + $0x18] sm:$0xf]
    %v454 = vld [vmem:[#allocation7 + $0x1c] sm:$0xf]
    %v455 = vld [vmem:[#allocation7 + $0x20] sm:$0xf]
    %v456 = vld [vmem:[#allocation7 + $0x24] sm:$0xf]
    %v457 = vld [vmem:[#allocation7 + $0x28] sm:$0xf]
    %v458 = vld [vmem:[#allocation7 + $0x2c] sm:$0xf]
    %v459 = vld [vmem:[#allocation7 + $0x30] sm:$0xf]
    %v460 = vld [vmem:[#allocation7 + $0x34] sm:$0xf]
    %v461 = vld [vmem:[#allocation7 + $0x38] sm:$0xf]
    %v462 = vld [vmem:[#allocation7 + $0x3c] sm:$0xf]
    %v463 = vlaneseq
    %v464 = vshrl.u32 %v463, 7
    %v465 = vsub.s32 0, %v464
    %v466 = vrot.slane %v86, %v465
    %v483 = vunpack.c.l.b16 %v447
    %v484 = vunpack.c.l.b16 %v448
    %v485 = vunpack.c.l.b16 %v449
    %v486 = vunpack.c.l.b16 %v450
    %v487 = vunpack.c.l.b16 %v451
    %v488 = vunpack.c.l.b16 %v452
    %v489 = vunpack.c.l.b16 %v453
    %v490 = vunpack.c.l.b16 %v454
    %v491 = vunpack.c.l.b16 %v455
    %v492 = vunpack.c.l.b16 %v456
    %v493 = vunpack.c.l.b16 %v457
    %v494 = vunpack.c.l.b16 %v458
    %v495 = vunpack.c.l.b16 %v459
    %v496 = vunpack.c.l.b16 %v460
    %v497 = vunpack.c.l.b16 %v461
    %v498 = vunpack.c.l.b16 %v462
    %v499 = vpack.c.b16 %v484, %v483
    %v500 = vpack.c.b16 %v486, %v485
    %v501 = vpack.c.b16 %v488, %v487
    %v502 = vpack.c.b16 %v490, %v489
    %v503 = vpack.c.b16 %v492, %v491
    %v504 = vpack.c.b16 %v494, %v493
    %v505 = vpack.c.b16 %v496, %v495
    %v506 = vpack.c.b16 %v498, %v497
    %515 = vmatprep.subr.bf16.mxu0 0
    %516 = vmatpush1.bf16.msra.mxu0 %v499
    %517 = vmatprep.subr.bf16.mxu0 0
    %518 = vmatpush1.bf16.msra.mxu0 %v500
    %519 = vmatprep.subr.bf16.mxu0 0
    %520 = vmatpush1.bf16.msra.mxu0 %v501
    %521 = vmatprep.subr.bf16.mxu0 0
    %522 = vmatpush1.bf16.msra.mxu0 %v502
    %523 = vmatprep.subr.bf16.mxu0 0
    %524 = vmatpush1.bf16.msra.mxu0 %v503
    %525 = vmatprep.subr.bf16.mxu0 0
    %526 = vmatpush1.bf16.msra.mxu0 %v504
    %527 = vmatprep.subr.bf16.mxu0 0
    %528 = vmatpush1.bf16.msra.mxu0 %v505
    %529 = vmatprep.subr.bf16.mxu0 0
    %530 = vmatpush1.bf16.msra.mxu0 %v506
    %531 = vmatprep.subr.bf16.mxu0 0
    %532 = vmatpush1.bf16.msra.mxu0 0
    %533 = vmatprep.subr.bf16.mxu0 0
    %534 = vmatpush1.bf16.msra.mxu0 0
    %535 = vmatprep.subr.bf16.mxu0 0
    %536 = vmatpush1.bf16.msra.mxu0 0
    %537 = vmatprep.subr.bf16.mxu0 0
    %538 = vmatpush1.bf16.msra.mxu0 0
    %539 = vmatprep.subr.bf16.mxu0 0
    %540 = vmatpush1.bf16.msra.mxu0 0
    %541 = vmatprep.subr.bf16.mxu0 0
    %542 = vmatpush1.bf16.msra.mxu0 0
    %543 = vmatprep.subr.bf16.mxu0 0
    %544 = vmatpush1.bf16.msra.mxu0 0
    %545 = vmatprep.subr.bf16.mxu0 0
    %546 = vmatpush1.bf16.msra.mxu0 0
    %547 = vmatprep.mubr.bf16.mxu0 0
    %548 = vmatmul.mubr.bf16.gmra.mrb[0].mxu0 %v446
    %v549 = vpop.f32.mrb[0].mxu0
    %v550 = vadd.f32 %v466, %v549
    %v551 = vpop.f32.mrb[0].mxu0
    %v552 = vpop.f32.mrb[0].mxu0
    %v553 = vadd.f32 %v466, %v552
    %v554 = vpop.f32.mrb[0].mxu0
    %555 = vdwg.mxu0
    %v556 = vmul.f32 %v550, 0.5
    %v557 = vmul.f32 %v553, 0.5
    %v558 = vtanh.pop %v556
    %v559 = vtanh.pop %v557
    %v560 = vmul.f32 %v558, 0.5
    %v561 = vmul.f32 %v559, 0.5
    %v562 = vadd.f32 %v560, 0.5
    %v563 = vadd.f32 %v561, 0.5
    %564 = vst [vmem:[%s6] sm:$0xff] %v326
    %565 = vst [vmem:[%s6 + $0x8] sm:$0xff] %v327
    %566 = vst [vmem:[%s7] sm:$0xff] %v562
    %567 = vst [vmem:[%s7 + $0x8] sm:$0xff] %v563
    // Predicated region
    $region42: #{autoencoder_forward.1} parent=1 // pred_check
      _
    $region43: #{autoencoder_forward.1} parent=1 // pred_check_branch
      %569 = sbr.rel (0) target = $region45
    $region44: #{autoencoder_forward.1} parent=1 // pred_region
      _
    $region45: #{autoencoder_forward.1} parent=1 // pred_fallthru
      _
    // Predicated region
    $region46: #{autoencoder_forward.1} parent=1 // pred_check
      _
    $region47: #{autoencoder_forward.1} parent=1 // pred_check_branch
      %571 = sbr.rel (0) target = $region49
    $region48: #{autoencoder_forward.1} parent=1 // pred_region
      _
    $region49: #{autoencoder_forward.1} parent=1 // pred_fallthru
      _
    // Predicated region
    $region50: #{autoencoder_forward.1} parent=1 // pred_check
      _
    $region51: #{autoencoder_forward.1} parent=1 // pred_check_branch
      %573 = sbr.rel (0) target = $region53
    $region52: #{autoencoder_forward.1} parent=1 // pred_region
      _
    $region53: #{autoencoder_forward.1} parent=1 // pred_fallthru
      _
    // Predicated region
    $region54: #{autoencoder_forward.1} parent=1 // pred_check
      _
    $region55: #{autoencoder_forward.1} parent=1 // pred_check_branch
      %575 = sbr.rel (0) target = $region57
    $region56: #{autoencoder_forward.1} parent=1 // pred_region
      _
    $region57: #{autoencoder_forward.1} parent=1 // pred_fallthru
      _
    %576 = vsyncpa [#allocation3], 1
    %577 = vsyncpa [#allocation5], 1
    %578 = vsyncpa [#allocation8], 1

// kernel: autoencoder_forward.1
$region0: #{autoencoder_forward.1}
  #allocation0 [shape = 'u32[]', space=smem, size = 0x4, offset = 0x4, fixed_abs, tag = 'smem constant byte address 0x4 - core index']
  #allocation1 [shape = 'u32[144,128]{1,0:T(1,128)}', space=vmem, size = 0x12000, scoped, tag = 'internal scratch']
  %s0 = inlined_call_operand.vmem [shape: bf16[16,128], index: 0, kind: input, shape index: {}]
  %s1 = inlined_call_operand.hbm [shape: bf16[128,128], index: 1, kind: input, shape index: {}]
  %s2 = inlined_call_operand.hbm [shape: bf16[128,128], index: 2, kind: input, shape index: {}]
  %s3 = inlined_call_operand.hbm [shape: bf16[128,128], index: 3, kind: input, shape index: {}]
  %s4 = inlined_call_operand.hbm [shape: bf16[128,128], index: 4, kind: input, shape index: {}]
  %s5 = inlined_call_operand.vmem [shape: f32[4,128], index: 5, kind: input, shape index: {}]
  %s6 = inlined_call_operand.vmem [shape: f32[16,128], index: 6, kind: output, shape index: {0}]
  %s7 = inlined_call_operand.vmem [shape: f32[16,128], index: 7, kind: output, shape index: {1}]
  %8 = xla_tuple %s6, %s7
  %s9 = sld [smem:[#allocation0]]
  $region58: #{autoencoder_forward.1} parent=0
    _
  %s11 = ssub.s32 1, %s9
  %s12 = scalar_select 0, %s11, %s9
  $region1: #{autoencoder_forward.1} parent=0
    #allocation2 [shape = 'u8[32768]{0}', space=vmem, size = 0x8000, scoped, tag = 'input window, operand 1, single buffered']
    #allocation3 [shape = 's32[1]{0}', space=sflag, size = 0x4, scoped, tag = 'scoped memory for autoencoder_forward.1']
    #allocation4 [shape = 'u8[32768]{0}', space=vmem, size = 0x8000, scoped, tag = 'input window, operand 2, single buffered']
    #allocation5 [shape = 's32[1]{0}', space=sflag, size = 0x4, scoped, tag = 'scoped memory for autoencoder_forward.1']
    #allocation6 [shape = 'u8[32768]{0}', space=vmem, size = 0x8000, scoped, tag = 'input window, operand 3, single buffered']
    #allocation7 [shape = 'u8[32768]{0}', space=vmem, size = 0x8000, scoped, tag = 'input window, operand 4, single buffered']
    #allocation8 [shape = 's32[1]{0}', space=sflag, size = 0x4, scoped, tag = 'scoped memory for autoencoder_forward.1']
    %13 = vsyncpa [#allocation3], 0
    %14 = vsyncpa [#allocation5], 0
    %15 = vsyncpa [#allocation8], 0
    // Predicated region
    $region2: #{autoencoder_forward.1} parent=1 // pred_check
      _
    $region3: #{autoencoder_forward.1} parent=1 // pred_check_branch
      %17 = sbr.rel (0) target = $region5
    $region4: #{autoencoder_forward.1} parent=1 // pred_region
      _
    $region5: #{autoencoder_forward.1} parent=1 // pred_fallthru
      _
    // Predicated region
    $region6: #{autoencoder_forward.1} parent=1 // pred_check
      _
    $region7: #{autoencoder_forward.1} parent=1 // pred_check_branch
      %19 = sbr.rel (0) target = $region9
    $region8: #{autoencoder_forward.1} parent=1 // pred_region
      %s21 = ssub.s32 1024, 1024
      %22 = vsyncadd [#allocation3], %s21
      %s23 = sshll.u32 [#allocation2], 4
      %s24 = int_to_ptr.vmem [resolvable:$true] %s23
      %29 = dma.hbm_to_vmem [thread:$0]  %s1, 1024, %s24, [#allocation3], 64, 64, 4
    $region9: #{autoencoder_forward.1} parent=1 // pred_fallthru
      _
    // Predicated region
    $region10: #{autoencoder_forward.1} parent=1 // pred_check
      _
    $region11: #{autoencoder_forward.1} parent=1 // pred_check_branch
      %31 = sbr.rel (0) target = $region13
    $region12: #{autoencoder_forward.1} parent=1 // pred_region
      %s33 = ssub.s32 1024, 1024
      %34 = vsyncadd [#allocation5], %s33
      %s35 = sshll.u32 [#allocation4], 4
      %s36 = int_to_ptr.vmem [resolvable:$true] %s35
      %41 = dma.hbm_to_vmem [thread:$0]  %s2, 1024, %s36, [#allocation5], 64, 64, 4
    $region13: #{autoencoder_forward.1} parent=1 // pred_fallthru
      _
    // Predicated region
    $region14: #{autoencoder_forward.1} parent=1 // pred_check
      _
    $region15: #{autoencoder_forward.1} parent=1 // pred_check_branch
      %43 = sbr.rel (0) target = $region17
    $region16: #{autoencoder_forward.1} parent=1 // pred_region
      %s45 = ssub.s32 1024, 1024
      %46 = vsyncadd [#allocation5], %s45
      %s47 = sshll.u32 [#allocation6], 4
      %s48 = int_to_ptr.vmem [resolvable:$true] %s47
      %53 = dma.hbm_to_vmem [thread:$0]  %s3, 1024, %s48, [#allocation5], 64, 64, 4
    $region17: #{autoencoder_forward.1} parent=1 // pred_fallthru
      _
    // Predicated region
    $region18: #{autoencoder_forward.1} parent=1 // pred_check
      _
    $region19: #{autoencoder_forward.1} parent=1 // pred_check_branch
      %55 = sbr.rel (0) target = $region21
    $region20: #{autoencoder_forward.1} parent=1 // pred_region
      %s57 = ssub.s32 1024, 1024
      %58 = vsyncadd [#allocation8], %s57
      %s59 = sshll.u32 [#allocation7], 4
      %s60 = int_to_ptr.vmem [resolvable:$true] %s59
      %65 = dma.hbm_to_vmem [thread:$0]  %s4, 1024, %s60, [#allocation8], 64, 64, 4
    $region21: #{autoencoder_forward.1} parent=1 // pred_fallthru
      _
    // Predicated region
    $region22: #{autoencoder_forward.1} parent=1 // pred_check
      _
    $region23: #{autoencoder_forward.1} parent=1 // pred_check_branch
      %67 = sbr.rel (0) target = $region25
    $region24: #{autoencoder_forward.1} parent=1 // pred_region
      _
    $region25: #{autoencoder_forward.1} parent=1 // pred_fallthru
      _
    // Predicated region
    $region26: #{autoencoder_forward.1} parent=1 // pred_check
      _
    $region27: #{autoencoder_forward.1} parent=1 // pred_check_branch
      %69 = sbr.rel (0) target = $region29
    $region28: #{autoencoder_forward.1} parent=1 // pred_region
      %70 = dma.done [#allocation3], 1024
    $region29: #{autoencoder_forward.1} parent=1 // pred_fallthru
      _
    // Predicated region
    $region30: #{autoencoder_forward.1} parent=1 // pred_check
      _
    $region31: #{autoencoder_forward.1} parent=1 // pred_check_branch
      %72 = sbr.rel (0) target = $region33
    $region32: #{autoencoder_forward.1} parent=1 // pred_region
      %73 = dma.done [#allocation5], 1024
    $region33: #{autoencoder_forward.1} parent=1 // pred_fallthru
      _
    // Predicated region
    $region34: #{autoencoder_forward.1} parent=1 // pred_check
      _
    $region35: #{autoencoder_forward.1} parent=1 // pred_check_branch
      %75 = sbr.rel (0) target = $region37
    $region36: #{autoencoder_forward.1} parent=1 // pred_region
      %76 = dma.done [#allocation5], 1024
    $region37: #{autoencoder_forward.1} parent=1 // pred_fallthru
      _
    // Predicated region
    $region38: #{autoencoder_forward.1} parent=1 // pred_check
      _
    $region39: #{autoencoder_forward.1} parent=1 // pred_check_branch
      %78 = sbr.rel (0) target = $region41
    $region40: #{autoencoder_forward.1} parent=1 // pred_region
      %79 = dma.done [#allocation8], 1024
    $region41: #{autoencoder_forward.1} parent=1 // pred_fallthru
      _
    %v81 = vld [vmem:[%s0] sm:$0xf]
    %v82 = vld [vmem:[%s0 + $0x4] sm:$0xf]
    %v83 = vld [vmem:[%s5] sm:$0x1]
    %v84 = vld [vmem:[%s5 + $0x1] sm:$0x1]
    %v85 = vld [vmem:[%s5 + $0x2] sm:$0x1]
    %v86 = vld [vmem:[%s5 + $0x3] sm:$0x1]
    %v87 = vld [vmem:[#allocation2] sm:$0xf]
    %v88 = vld [vmem:[#allocation2 + $0x4] sm:$0xf]
    %v89 = vld [vmem:[#allocation2 + $0x8] sm:$0xf]
    %v90 = vld [vmem:[#allocation2 + $0xc] sm:$0xf]
    %v91 = vld [vmem:[#allocation2 + $0x10] sm:$0xf]
    %v92 = vld [vmem:[#allocation2 + $0x14] sm:$0xf]
    %v93 = vld [vmem:[#allocation2 + $0x18] sm:$0xf]
    %v94 = vld [vmem:[#allocation2 + $0x1c] sm:$0xf]
    %v95 = vld [vmem:[#allocation2 + $0x20] sm:$0xf]
    %v96 = vld [vmem:[#allocation2 + $0x24] sm:$0xf]
    %v97 = vld [vmem:[#allocation2 + $0x28] sm:$0xf]
    %v98 = vld [vmem:[#allocation2 + $0x2c] sm:$0xf]
    %v99 = vld [vmem:[#allocation2 + $0x30] sm:$0xf]
    %v100 = vld [vmem:[#allocation2 + $0x34] sm:$0xf]
    %v101 = vld [vmem:[#allocation2 + $0x38] sm:$0xf]
    %v102 = vld [vmem:[#allocation2 + $0x3c] sm:$0xf]
    %v103 = vlaneseq
    %v104 = vshrl.u32 %v103, 7
    %v105 = vsub.s32 0, %v104
    %v106 = vrot.slane %v83, %v105
    %v109 = vunpack.c.l.b16 %v81
    %v110 = vunpack.c.l.b16 %v82
    %v111 = vpack.c.b16 %v110, %v109
    %v129 = vunpack.c.l.b16 %v87
    %v130 = vunpack.c.l.b16 %v88
    %v131 = vunpack.c.l.b16 %v89
    %v132 = vunpack.c.l.b16 %v90
    %v133 = vunpack.c.l.b16 %v91
    %v134 = vunpack.c.l.b16 %v92
    %v135 = vunpack.c.l.b16 %v93
    %v136 = vunpack.c.l.b16 %v94
    %v137 = vunpack.c.l.b16 %v95
    %v138 = vunpack.c.l.b16 %v96
    %v139 = vunpack.c.l.b16 %v97
    %v140 = vunpack.c.l.b16 %v98
    %v141 = vunpack.c.l.b16 %v99
    %v142 = vunpack.c.l.b16 %v100
    %v143 = vunpack.c.l.b16 %v101
    %v144 = vunpack.c.l.b16 %v102
    %v145 = vpack.c.b16 %v130, %v129
    %v146 = vpack.c.b16 %v132, %v131
    %v147 = vpack.c.b16 %v134, %v133
    %v148 = vpack.c.b16 %v136, %v135
    %v149 = vpack.c.b16 %v138, %v137
    %v150 = vpack.c.b16 %v140, %v139
    %v151 = vpack.c.b16 %v142, %v141
    %v152 = vpack.c.b16 %v144, %v143
    %161 = vmatprep.subr.bf16.mxu0 0
    %162 = vmatpush1.bf16.msra.mxu0 %v145
    %163 = vmatprep.subr.bf16.mxu0 0
    %164 = vmatpush1.bf16.msra.mxu0 %v146
    %165 = vmatprep.subr.bf16.mxu0 0
    %166 = vmatpush1.bf16.msra.mxu0 %v147
    %167 = vmatprep.subr.bf16.mxu0 0
    %168 = vmatpush1.bf16.msra.mxu0 %v148
    %169 = vmatprep.subr.bf16.mxu0 0
    %170 = vmatpush1.bf16.msra.mxu0 %v149
    %171 = vmatprep.subr.bf16.mxu0 0
    %172 = vmatpush1.bf16.msra.mxu0 %v150
    %173 = vmatprep.subr.bf16.mxu0 0
    %174 = vmatpush1.bf16.msra.mxu0 %v151
    %175 = vmatprep.subr.bf16.mxu0 0
    %176 = vmatpush1.bf16.msra.mxu0 %v152
    %177 = vmatprep.subr.bf16.mxu0 0
    %178 = vmatpush1.bf16.msra.mxu0 0
    %179 = vmatprep.subr.bf16.mxu0 0
    %180 = vmatpush1.bf16.msra.mxu0 0
    %181 = vmatprep.subr.bf16.mxu0 0
    %182 = vmatpush1.bf16.msra.mxu0 0
    %183 = vmatprep.subr.bf16.mxu0 0
    %184 = vmatpush1.bf16.msra.mxu0 0
    %185 = vmatprep.subr.bf16.mxu0 0
    %186 = vmatpush1.bf16.msra.mxu0 0
    %187 = vmatprep.subr.bf16.mxu0 0
    %188 = vmatpush1.bf16.msra.mxu0 0
    %189 = vmatprep.subr.bf16.mxu0 0
    %190 = vmatpush1.bf16.msra.mxu0 0
    %191 = vmatprep.subr.bf16.mxu0 0
    %192 = vmatpush1.bf16.msra.mxu0 0
    %193 = vmatprep.mubr.bf16.mxu0 0
    %194 = vmatmul.mubr.bf16.gmra.mrb[0].mxu0 %v111
    %v195 = vpop.f32.mrb[0].mxu0
    %v196 = vadd.f32 %v106, %v195
    %v197 = vpop.f32.mrb[0].mxu0
    %v198 = vpop.f32.mrb[0].mxu0
    %v199 = vadd.f32 %v106, %v198
    %v200 = vpop.f32.mrb[0].mxu0
    %201 = vdwg.mxu0
    %v202 = vmul.f32 %v196, 0.5
    %v203 = vmul.f32 %v199, 0.5
    %v204 = vtanh.pop %v202
    %v205 = vtanh.pop %v203
    %v206 = vmul.f32 %v204, 0.5
    %v207 = vmul.f32 %v205, 0.5
    %v208 = vadd.f32 %v206, 0.5
    %v209 = vadd.f32 %v207, 0.5
    %v210 = vpack.c.bf16 %v209, %v208
    %v211 = vld [vmem:[#allocation4] sm:$0xf]
    %v212 = vld [vmem:[#allocation4 + $0x4] sm:$0xf]
    %v213 = vld [vmem:[#allocation4 + $0x8] sm:$0xf]
    %v214 = vld [vmem:[#allocation4 + $0xc] sm:$0xf]
    %v215 = vld [vmem:[#allocation4 + $0x10] sm:$0xf]
    %v216 = vld [vmem:[#allocation4 + $0x14] sm:$0xf]
    %v217 = vld [vmem:[#allocation4 + $0x18] sm:$0xf]
    %v218 = vld [vmem:[#allocation4 + $0x1c] sm:$0xf]
    %v219 = vld [vmem:[#allocation4 + $0x20] sm:$0xf]
    %v220 = vld [vmem:[#allocation4 + $0x24] sm:$0xf]
    %v221 = vld [vmem:[#allocation4 + $0x28] sm:$0xf]
    %v222 = vld [vmem:[#allocation4 + $0x2c] sm:$0xf]
    %v223 = vld [vmem:[#allocation4 + $0x30] sm:$0xf]
    %v224 = vld [vmem:[#allocation4 + $0x34] sm:$0xf]
    %v225 = vld [vmem:[#allocation4 + $0x38] sm:$0xf]
    %v226 = vld [vmem:[#allocation4 + $0x3c] sm:$0xf]
    %v227 = vlaneseq
    %v228 = vshrl.u32 %v227, 7
    %v229 = vsub.s32 0, %v228
    %v230 = vrot.slane %v84, %v229
    %v247 = vunpack.c.l.b16 %v211
    %v248 = vunpack.c.l.b16 %v212
    %v249 = vunpack.c.l.b16 %v213
    %v250 = vunpack.c.l.b16 %v214
    %v251 = vunpack.c.l.b16 %v215
    %v252 = vunpack.c.l.b16 %v216
    %v253 = vunpack.c.l.b16 %v217
    %v254 = vunpack.c.l.b16 %v218
    %v255 = vunpack.c.l.b16 %v219
    %v256 = vunpack.c.l.b16 %v220
    %v257 = vunpack.c.l.b16 %v221
    %v258 = vunpack.c.l.b16 %v222
    %v259 = vunpack.c.l.b16 %v223
    %v260 = vunpack.c.l.b16 %v224
    %v261 = vunpack.c.l.b16 %v225
    %v262 = vunpack.c.l.b16 %v226
    %v263 = vpack.c.b16 %v248, %v247
    %v264 = vpack.c.b16 %v250, %v249
    %v265 = vpack.c.b16 %v252, %v251
    %v266 = vpack.c.b16 %v254, %v253
    %v267 = vpack.c.b16 %v256, %v255
    %v268 = vpack.c.b16 %v258, %v257
    %v269 = vpack.c.b16 %v260, %v259
    %v270 = vpack.c.b16 %v262, %v261
    %279 = vmatprep.subr.bf16.mxu0 0
    %280 = vmatpush1.bf16.msra.mxu0 %v263
    %281 = vmatprep.subr.bf16.mxu0 0
    %282 = vmatpush1.bf16.msra.mxu0 %v264
    %283 = vmatprep.subr.bf16.mxu0 0
    %284 = vmatpush1.bf16.msra.mxu0 %v265
    %285 = vmatprep.subr.bf16.mxu0 0
    %286 = vmatpush1.bf16.msra.mxu0 %v266
    %287 = vmatprep.subr.bf16.mxu0 0
    %288 = vmatpush1.bf16.msra.mxu0 %v267
    %289 = vmatprep.subr.bf16.mxu0 0
    %290 = vmatpush1.bf16.msra.mxu0 %v268
    %291 = vmatprep.subr.bf16.mxu0 0
    %292 = vmatpush1.bf16.msra.mxu0 %v269
    %293 = vmatprep.subr.bf16.mxu0 0
    %294 = vmatpush1.bf16.msra.mxu0 %v270
    %295 = vmatprep.subr.bf16.mxu0 0
    %296 = vmatpush1.bf16.msra.mxu0 0
    %297 = vmatprep.subr.bf16.mxu0 0
    %298 = vmatpush1.bf16.msra.mxu0 0
    %299 = vmatprep.subr.bf16.mxu0 0
    %300 = vmatpush1.bf16.msra.mxu0 0
    %301 = vmatprep.subr.bf16.mxu0 0
    %302 = vmatpush1.bf16.msra.mxu0 0
    %303 = vmatprep.subr.bf16.mxu0 0
    %304 = vmatpush1.bf16.msra.mxu0 0
    %305 = vmatprep.subr.bf16.mxu0 0
    %306 = vmatpush1.bf16.msra.mxu0 0
    %307 = vmatprep.subr.bf16.mxu0 0
    %308 = vmatpush1.bf16.msra.mxu0 0
    %309 = vmatprep.subr.bf16.mxu0 0
    %310 = vmatpush1.bf16.msra.mxu0 0
    %311 = vmatprep.mubr.bf16.mxu0 0
    %312 = vmatmul.mubr.bf16.gmra.mrb[0].mxu0 %v210
    %v313 = vpop.f32.mrb[0].mxu0
    %v314 = vadd.f32 %v230, %v313
    %v315 = vpop.f32.mrb[0].mxu0
    %v316 = vpop.f32.mrb[0].mxu0
    %v317 = vadd.f32 %v230, %v316
    %v318 = vpop.f32.mrb[0].mxu0
    %319 = vdwg.mxu0
    %v320 = vmul.f32 %v314, 0.5
    %v321 = vmul.f32 %v317, 0.5
    %v322 = vtanh.pop %v320
    %v323 = vtanh.pop %v321
    %v324 = vmul.f32 %v322, 0.5
    %v325 = vmul.f32 %v323, 0.5
    %v326 = vadd.f32 %v324, 0.5
    %v327 = vadd.f32 %v325, 0.5
    %v328 = vpack.c.bf16 %v327, %v326
    %v329 = vld [vmem:[#allocation6] sm:$0xf]
    %v330 = vld [vmem:[#allocation6 + $0x4] sm:$0xf]
    %v331 = vld [vmem:[#allocation6 + $0x8] sm:$0xf]
    %v332 = vld [vmem:[#allocation6 + $0xc] sm:$0xf]
    %v333 = vld [vmem:[#allocation6 + $0x10] sm:$0xf]
    %v334 = vld [vmem:[#allocation6 + $0x14] sm:$0xf]
    %v335 = vld [vmem:[#allocation6 + $0x18] sm:$0xf]
    %v336 = vld [vmem:[#allocation6 + $0x1c] sm:$0xf]
    %v337 = vld [vmem:[#allocation6 + $0x20] sm:$0xf]
    %v338 = vld [vmem:[#allocation6 + $0x24] sm:$0xf]
    %v339 = vld [vmem:[#allocation6 + $0x28] sm:$0xf]
    %v340 = vld [vmem:[#allocation6 + $0x2c] sm:$0xf]
    %v341 = vld [vmem:[#allocation6 + $0x30] sm:$0xf]
    %v342 = vld [vmem:[#allocation6 + $0x34] sm:$0xf]
    %v343 = vld [vmem:[#allocation6 + $0x38] sm:$0xf]
    %v344 = vld [vmem:[#allocation6 + $0x3c] sm:$0xf]
    %v345 = vlaneseq
    %v346 = vshrl.u32 %v345, 7
    %v347 = vsub.s32 0, %v346
    %v348 = vrot.slane %v85, %v347
    %v365 = vunpack.c.l.b16 %v329
    %v366 = vunpack.c.l.b16 %v330
    %v367 = vunpack.c.l.b16 %v331
    %v368 = vunpack.c.l.b16 %v332
    %v369 = vunpack.c.l.b16 %v333
    %v370 = vunpack.c.l.b16 %v334
    %v371 = vunpack.c.l.b16 %v335
    %v372 = vunpack.c.l.b16 %v336
    %v373 = vunpack.c.l.b16 %v337
    %v374 = vunpack.c.l.b16 %v338
    %v375 = vunpack.c.l.b16 %v339
    %v376 = vunpack.c.l.b16 %v340
    %v377 = vunpack.c.l.b16 %v341
    %v378 = vunpack.c.l.b16 %v342
    %v379 = vunpack.c.l.b16 %v343
    %v380 = vunpack.c.l.b16 %v344
    %v381 = vpack.c.b16 %v366, %v365
    %v382 = vpack.c.b16 %v368, %v367
    %v383 = vpack.c.b16 %v370, %v369
    %v384 = vpack.c.b16 %v372, %v371
    %v385 = vpack.c.b16 %v374, %v373
    %v386 = vpack.c.b16 %v376, %v375
    %v387 = vpack.c.b16 %v378, %v377
    %v388 = vpack.c.b16 %v380, %v379
    %397 = vmatprep.subr.bf16.mxu0 0
    %398 = vmatpush1.bf16.msra.mxu0 %v381
    %399 = vmatprep.subr.bf16.mxu0 0
    %400 = vmatpush1.bf16.msra.mxu0 %v382
    %401 = vmatprep.subr.bf16.mxu0 0
    %402 = vmatpush1.bf16.msra.mxu0 %v383
    %403 = vmatprep.subr.bf16.mxu0 0
    %404 = vmatpush1.bf16.msra.mxu0 %v384
    %405 = vmatprep.subr.bf16.mxu0 0
    %406 = vmatpush1.bf16.msra.mxu0 %v385
    %407 = vmatprep.subr.bf16.mxu0 0
    %408 = vmatpush1.bf16.msra.mxu0 %v386
    %409 = vmatprep.subr.bf16.mxu0 0
    %410 = vmatpush1.bf16.msra.mxu0 %v387
    %411 = vmatprep.subr.bf16.mxu0 0
    %412 = vmatpush1.bf16.msra.mxu0 %v388
    %413 = vmatprep.subr.bf16.mxu0 0
    %414 = vmatpush1.bf16.msra.mxu0 0
    %415 = vmatprep.subr.bf16.mxu0 0
    %416 = vmatpush1.bf16.msra.mxu0 0
    %417 = vmatprep.subr.bf16.mxu0 0
    %418 = vmatpush1.bf16.msra.mxu0 0
    %419 = vmatprep.subr.bf16.mxu0 0
    %420 = vmatpush1.bf16.msra.mxu0 0
    %421 = vmatprep.subr.bf16.mxu0 0
    %422 = vmatpush1.bf16.msra.mxu0 0
    %423 = vmatprep.subr.bf16.mxu0 0
    %424 = vmatpush1.bf16.msra.mxu0 0
    %425 = vmatprep.subr.bf16.mxu0 0
    %426 = vmatpush1.bf16.msra.mxu0 0
    %427 = vmatprep.subr.bf16.mxu0 0
    %428 = vmatpush1.bf16.msra.mxu0 0
    %429 = vmatprep.mubr.bf16.mxu0 0
    %430 = vmatmul.mubr.bf16.gmra.mrb[0].mxu0 %v328
    %v431 = vpop.f32.mrb[0].mxu0
    %v432 = vadd.f32 %v348, %v431
    %v433 = vpop.f32.mrb[0].mxu0
    %v434 = vpop.f32.mrb[0].mxu0
    %v435 = vadd.f32 %v348, %v434
    %v436 = vpop.f32.mrb[0].mxu0
    %437 = vdwg.mxu0
    %v438 = vmul.f32 %v432, 0.5
    %v439 = vmul.f32 %v435, 0.5
    %v440 = vtanh.pop %v438
    %v441 = vtanh.pop %v439
    %v442 = vmul.f32 %v440, 0.5
    %v443 = vmul.f32 %v441, 0.5
    %v444 = vadd.f32 %v442, 0.5
    %v445 = vadd.f32 %v443, 0.5
    %v446 = vpack.c.bf16 %v445, %v444
    %v447 = vld [vmem:[#allocation7] sm:$0xf]
    %v448 = vld [vmem:[#allocation7 + $0x4] sm:$0xf]
    %v449 = vld [vmem:[#allocation7 + $0x8] sm:$0xf]
    %v450 = vld [vmem:[#allocation7 + $0xc] sm:$0xf]
    %v451 = vld [vmem:[#allocation7 + $0x10] sm:$0xf]
    %v452 = vld [vmem:[#allocation7 + $0x14] sm:$0xf]
    %v453 = vld [vmem:[#allocation7 + $0x18] sm:$0xf]
    %v454 = vld [vmem:[#allocation7 + $0x1c] sm:$0xf]
    %v455 = vld [vmem:[#allocation7 + $0x20] sm:$0xf]
    %v456 = vld [vmem:[#allocation7 + $0x24] sm:$0xf]
    %v457 = vld [vmem:[#allocation7 + $0x28] sm:$0xf]
    %v458 = vld [vmem:[#allocation7 + $0x2c] sm:$0xf]
    %v459 = vld [vmem:[#allocation7 + $0x30] sm:$0xf]
    %v460 = vld [vmem:[#allocation7 + $0x34] sm:$0xf]
    %v461 = vld [vmem:[#allocation7 + $0x38] sm:$0xf]
    %v462 = vld [vmem:[#allocation7 + $0x3c] sm:$0xf]
    %v463 = vlaneseq
    %v464 = vshrl.u32 %v463, 7
    %v465 = vsub.s32 0, %v464
    %v466 = vrot.slane %v86, %v465
    %v483 = vunpack.c.l.b16 %v447
    %v484 = vunpack.c.l.b16 %v448
    %v485 = vunpack.c.l.b16 %v449
    %v486 = vunpack.c.l.b16 %v450
    %v487 = vunpack.c.l.b16 %v451
    %v488 = vunpack.c.l.b16 %v452
    %v489 = vunpack.c.l.b16 %v453
    %v490 = vunpack.c.l.b16 %v454
    %v491 = vunpack.c.l.b16 %v455
    %v492 = vunpack.c.l.b16 %v456
    %v493 = vunpack.c.l.b16 %v457
    %v494 = vunpack.c.l.b16 %v458
    %v495 = vunpack.c.l.b16 %v459
    %v496 = vunpack.c.l.b16 %v460
    %v497 = vunpack.c.l.b16 %v461
    %v498 = vunpack.c.l.b16 %v462
    %v499 = vpack.c.b16 %v484, %v483
    %v500 = vpack.c.b16 %v486, %v485
    %v501 = vpack.c.b16 %v488, %v487
    %v502 = vpack.c.b16 %v490, %v489
    %v503 = vpack.c.b16 %v492, %v491
    %v504 = vpack.c.b16 %v494, %v493
    %v505 = vpack.c.b16 %v496, %v495
    %v506 = vpack.c.b16 %v498, %v497
    %515 = vmatprep.subr.bf16.mxu0 0
    %516 = vmatpush1.bf16.msra.mxu0 %v499
    %517 = vmatprep.subr.bf16.mxu0 0
    %518 = vmatpush1.bf16.msra.mxu0 %v500
    %519 = vmatprep.subr.bf16.mxu0 0
    %520 = vmatpush1.bf16.msra.mxu0 %v501
    %521 = vmatprep.subr.bf16.mxu0 0
    %522 = vmatpush1.bf16.msra.mxu0 %v502
    %523 = vmatprep.subr.bf16.mxu0 0
    %524 = vmatpush1.bf16.msra.mxu0 %v503
    %525 = vmatprep.subr.bf16.mxu0 0
    %526 = vmatpush1.bf16.msra.mxu0 %v504
    %527 = vmatprep.subr.bf16.mxu0 0
    %528 = vmatpush1.bf16.msra.mxu0 %v505
    %529 = vmatprep.subr.bf16.mxu0 0
    %530 = vmatpush1.bf16.msra.mxu0 %v506
    %531 = vmatprep.subr.bf16.mxu0 0
    %532 = vmatpush1.bf16.msra.mxu0 0
    %533 = vmatprep.subr.bf16.mxu0 0
    %534 = vmatpush1.bf16.msra.mxu0 0
    %535 = vmatprep.subr.bf16.mxu0 0
    %536 = vmatpush1.bf16.msra.mxu0 0
    %537 = vmatprep.subr.bf16.mxu0 0
    %538 = vmatpush1.bf16.msra.mxu0 0
    %539 = vmatprep.subr.bf16.mxu0 0
    %540 = vmatpush1.bf16.msra.mxu0 0
    %541 = vmatprep.subr.bf16.mxu0 0
    %542 = vmatpush1.bf16.msra.mxu0 0
    %543 = vmatprep.subr.bf16.mxu0 0
    %544 = vmatpush1.bf16.msra.mxu0 0
    %545 = vmatprep.subr.bf16.mxu0 0
    %546 = vmatpush1.bf16.msra.mxu0 0
    %547 = vmatprep.mubr.bf16.mxu0 0
    %548 = vmatmul.mubr.bf16.gmra.mrb[0].mxu0 %v446
    %v549 = vpop.f32.mrb[0].mxu0
    %v550 = vadd.f32 %v466, %v549
    %v551 = vpop.f32.mrb[0].mxu0
    %v552 = vpop.f32.mrb[0].mxu0
    %v553 = vadd.f32 %v466, %v552
    %v554 = vpop.f32.mrb[0].mxu0
    %555 = vdwg.mxu0
    %v556 = vmul.f32 %v550, 0.5
    %v557 = vmul.f32 %v553, 0.5
    %v558 = vtanh.pop %v556
    %v559 = vtanh.pop %v557
    %v560 = vmul.f32 %v558, 0.5
    %v561 = vmul.f32 %v559, 0.5
    %v562 = vadd.f32 %v560, 0.5
    %v563 = vadd.f32 %v561, 0.5
    %564 = vst [vmem:[%s6] sm:$0xff] %v326
    %565 = vst [vmem:[%s6 + $0x8] sm:$0xff] %v327
    %566 = vst [vmem:[%s7] sm:$0xff] %v562
    %567 = vst [vmem:[%s7 + $0x8] sm:$0xff] %v563
    // Predicated region
    $region42: #{autoencoder_forward.1} parent=1 // pred_check
      _
    $region43: #{autoencoder_forward.1} parent=1 // pred_check_branch
      %569 = sbr.rel (0) target = $region45
    $region44: #{autoencoder_forward.1} parent=1 // pred_region
      _
    $region45: #{autoencoder_forward.1} parent=1 // pred_fallthru
      _
    // Predicated region
    $region46: #{autoencoder_forward.1} parent=1 // pred_check
      _
    $region47: #{autoencoder_forward.1} parent=1 // pred_check_branch
      %571 = sbr.rel (0) target = $region49
    $region48: #{autoencoder_forward.1} parent=1 // pred_region
      _
    $region49: #{autoencoder_forward.1} parent=1 // pred_fallthru
      _
    // Predicated region
    $region50: #{autoencoder_forward.1} parent=1 // pred_check
      _
    $region51: #{autoencoder_forward.1} parent=1 // pred_check_branch
      %573 = sbr.rel (0) target = $region53
    $region52: #{autoencoder_forward.1} parent=1 // pred_region
      _
    $region53: #{autoencoder_forward.1} parent=1 // pred_fallthru
      _
    // Predicated region
    $region54: #{autoencoder_forward.1} parent=1 // pred_check
      _
    $region55: #{autoencoder_forward.1} parent=1 // pred_check_branch
      %575 = sbr.rel (0) target = $region57
    $region56: #{autoencoder_forward.1} parent=1 // pred_region
      _
    $region57: #{autoencoder_forward.1} parent=1 // pred_fallthru
      _
    %576 = vsyncpa [#allocation3], 1
    %577 = vsyncpa [#allocation5], 1
    %578 = vsyncpa [#allocation8], 1

</llo_original>
